<compile_context>
chip_gen: v5e
topology: v5e:2x2
jax: 0.10.0
libtpu: 0.0.40
codegen_flags: <defaults>
</compile_context>

<pallas_src>
import jax
import jax.numpy as jnp
from jax.experimental import pallas as pl
from jax.experimental.pallas import tpu as pltpu

EMBEDDING_DIM = 192
NUM_EMBEDDINGS = 50
COMMITMENT_COST = 1.0
BN_EPS = 1e-5
CODEBOOK_PAD = 128                    # lane-dense distance / one-hot tiles
MATMUL_DTYPE = jnp.bfloat16           # MXU operand dtype (f32 accumulation)
VMEM_LIMIT_BYTES = 32 * 1024 * 1024


# ----------------------------- static layer planning -----------------------------
# Activations are held in VMEM as phase-major slabs:  buf[r, q, :] holds the
# activation at time index (q - m) * F + r  (zero outside the valid range), where
# F is the slab grouping and m the number of leading zero-pad slab rows.  With
# that layout every conv / transposed-conv tap becomes a contiguous static window
# read, and every layer output is written as contiguous per-phase slabs.

def _conv_out_len(t, k, s, p):
    return (t + 2 * p - k) // s + 1


def _convT_out_len(t, k, s, p):
    return (t - 1) * s - 2 * p + k


def _plan_conv(t_in, t_out, k_sz, stride, pad, g_in, g_out, m_out):
    """Plan one grouped Conv1d layer.

    Returns (phases, m_in, q_in) with
      phases = [(r_out, q_lo, n_rows, [(k, rho_in, row_shift), ...]), ...]
      reads  : in_buf[rho_in, q_lo + row_shift : q_lo + row_shift + n_rows, :]
      writes : output rows q_lo .. q_lo + n_rows - 1 of phase r_out.
    """
    cs = [r * stride + k - pad
          for r in range(g_out) if r < t_out for k in range(k_sz)]
    m_in = max(0, -min(c // g_in for c in cs)) if cs else 0
    q_in = m_in + (t_in - 1) // g_in + 1
    phases = []
    for r in range(g_out):
        if r >= t_out:
            continue
        q_lo = m_out
        n = (t_out - 1 - r) // g_out + 1
        taps = []
        for k in range(k_sz):
            c = r * stride + k - pad
            shift = c // g_in + m_in - m_out
            taps.append((k, c % g_in, shift))
            q_in = max(q_in, q_lo + n - 1 + shift + 1)
        phases.append((r, q_lo, n, taps))
    return phases, m_in, q_in


def _plan_convT(t_in, t_out, k_sz, stride, pad, f_in, f_out, m_out):
    """Plan one grouped ConvTranspose1d layer (same return convention)."""
    cs = [(r, k, r * stride + k - pad)
          for r in range(f_in) if r < t_in for k in range(k_sz)]
    m_in = max([0] + [c // f_out for (_, _, c) in cs])
    q_in = m_in + (t_in - 1) // f_in + 1
    phases = []
    for rpp in range(f_out):
        if rpp >= t_out:
            continue
        q_lo = m_out
        n = (t_out - 1 - rpp) // f_out + 1
        pairs = []
        for (r, k, c) in cs:
            if c % f_out != rpp:
                continue
            shift = m_in - m_out - c // f_out
            pairs.append((k, r, shift))
            q_in = max(q_in, q_lo + n - 1 + shift + 1)
        phases.append((rpp, q_lo, n, pairs))
    return phases, m_in, q_in


# ------------------------------ fused forward builder -----------------------------

def build_vqvae1d_forward(encoder_config, decoder_config, batch, t0):
    """Returns forward(params, x) with x: (batch, dim_feat, t0) -> (e_loss, recon)."""
    n_enc = len(encoder_config)
    n_dec = len(decoder_config)

    enc_t = [t0]
    for (_, _, k, s, p) in encoder_config:
        enc_t.append(_conv_out_len(enc_t[-1], k, s, p))
    t_e = enc_t[-1]
    dec_t = [t_e]
    for (_, _, k, s, p) in decoder_config:
        dec_t.append(_convT_out_len(dec_t[-1], k, s, p))
    t_fin = dec_t[-1]

    enc_out_ch = encoder_config[-1][1]
    dec_in_ch = decoder_config[0][0]
    c_fin = decoder_config[-1][1]

    # Telescoped phase groupings.
    enc_g_in, enc_g_out = [0] * n_enc, [0] * n_enc
    g = 1
    for i in reversed(range(n_enc)):
        enc_g_out[i] = g
        enc_g_in[i] = g * encoder_config[i][3]
        g = enc_g_in[i]
    dec_f_in, dec_f_out = [0] * n_dec, [0] * n_dec
    f = 1
    for j in range(n_dec):
        dec_f_in[j] = f
        dec_f_out[j] = f * decoder_config[j][3]
        f = dec_f_out[j]
    f_fin = dec_f_out[-1]
    q_fin = (t_fin - 1) // f_fin + 1

    # Plan back-to-front so every buffer's zero-padding matches its consumer.
    enc_plans, enc_buf = [None] * n_enc, [None] * n_enc     # enc_buf[i]: input of layer i
    m_next = 0                                              # last layer -> register value
    for i in reversed(range(n_enc)):
        cin, _, k, s, p = encoder_config[i]
        phases, m_in, q_in = _plan_conv(enc_t[i], enc_t[i + 1], k, s, p,
                                        enc_g_in[i], enc_g_out[i], m_next)
        enc_plans[i] = phases
        enc_buf[i] = (enc_g_in[i], q_in, m_in, cin)
        m_next = m_in

    dec_plans, dec_buf = [None] * n_dec, [None] * n_dec     # dec_buf[j]: input of layer j
    m_next = 0                                              # last layer -> output ref
    for j in reversed(range(n_dec)):
        cin, _, k, s, p = decoder_config[j]
        phases, m_in, q_in = _plan_convT(dec_t[j], dec_t[j + 1], k, s, p,
                                         dec_f_in[j], dec_f_out[j], m_next)
        dec_plans[j] = phases
        dec_buf[j] = (dec_f_in[j], q_in, m_in, cin)
        m_next = m_in

    g0, q0, m0, c0 = enc_buf[0]
    n_enc_scratch = n_enc - 1
    n_dec_scratch = n_dec

    # ----------------------------- the fused kernel -----------------------------
    def kernel(*refs):
        it = iter(refs)
        xg_ref = next(it)
        enc_w = [(next(it), next(it), next(it)) for _ in range(n_enc)]
        wl_ref = next(it); bl_ref = next(it); e_ref = next(it)
        esq_ref = next(it); wd_ref = next(it); bd_ref = next(it)
        dec_w = [(next(it), next(it), next(it)) for _ in range(n_dec)]
        recon_ref = next(it)
        loss_ref = next(it)
        enc_scr = [next(it) for _ in range(n_enc_scratch)]
        dec_scr = [next(it) for _ in range(n_dec_scratch)]

        # Zero scratch / output so phase-slab pad rows read as zero (each step).
        for r in enc_scr + dec_scr:
            r[...] = jnp.zeros_like(r)
        recon_ref[...] = jnp.zeros_like(recon_ref)

        def layer_phase(read, w_ref, s_ref, t_ref, q_lo, n, taps):
            cout = w_ref.shape[2]
            acc = jnp.zeros((n, cout), jnp.float32)
            for (k, rho, shift) in taps:
                a = q_lo + shift
                acc = acc + jnp.dot(read(rho, a, n).astype(MATMUL_DTYPE), w_ref[k],
                                    preferred_element_type=jnp.float32)
            return acc * s_ref[...] + t_ref[...]            # folded bias + eval-BN

        def reader_4d(ref):
            return lambda rho, a, n: ref[0, rho, a:a + n, :]

        def reader_3d(ref):
            return lambda rho, a, n: ref[rho, a:a + n, :]

        # ----- encoder: Conv1d stack (LeakyReLU(1.0) == identity, omitted) -----
        h_enc = None
        for i in range(n_enc):
            w_ref, s_ref, t_ref = enc_w[i]
            read = reader_4d(xg_ref) if i == 0 else reader_3d(enc_scr[i - 1])
            if i < n_enc - 1:
                dst = enc_scr[i]
                for (r_out, q_lo, n, taps) in enc_plans[i]:
                    dst[r_out, q_lo:q_lo + n, :] = layer_phase(
                        read, w_ref, s_ref, t_ref, q_lo, n, taps)
            else:
                (_, q_lo, n, taps) = enc_plans[i][0]        # G_out == 1: single phase
                h_enc = layer_phase(read, w_ref, s_ref, t_ref, q_lo, n, taps)

        # ----- lxm Linear -> VQ (nearest code, straight-through) -> decoder_embed -----
        z = jnp.dot(h_enc.astype(MATMUL_DTYPE), wl_ref[...],
                    preferred_element_type=jnp.float32) + bl_ref[...]       # (Te, D)
        e = e_ref[...]                                                      # (128, D) f32
        ze = jax.lax.dot_general(z, e, (((1,), (1,)), ((), ())),
                                 preferred_element_type=jnp.float32)        # (Te, 128)
        d = esq_ref[...] - 2.0 * ze            # |z|^2 dropped (argmin-invariant)
        dmin = jnp.min(d, axis=1, keepdims=True)
        iota = jax.lax.broadcasted_iota(jnp.int32, d.shape, 1)
        sel = jnp.min(jnp.where(d <= dmin, iota, d.shape[1]), axis=1, keepdims=True)
        onehot = (iota == sel).astype(jnp.float32)
        qv = jnp.dot(onehot, e, preferred_element_type=jnp.float32)          # (Te, D)
        diff = qv - z
        loss_ref[...] = jnp.sum(diff * diff) * jnp.ones((1, 1, 128), jnp.float32)
        d0 = jnp.dot(qv.astype(MATMUL_DTYPE), wd_ref[...],
                     preferred_element_type=jnp.float32) + bd_ref[...]       # (Te, dec_in)

        _, _, m_d0, _ = dec_buf[0]             # decoder input slab (F == 1, zero-padded)
        dec_scr[0][0, m_d0:m_d0 + t_e, :] = d0

        # ----- decoder: ConvTranspose1d stack -----
        for j in range(n_dec):
            w_ref, s_ref, t_ref = dec_w[j]
            read = reader_3d(dec_scr[j])
            if j < n_dec - 1:
                dst = dec_scr[j + 1]
                for (r_out, q_lo, n, taps) in dec_plans[j]:
                    dst[r_out, q_lo:q_lo + n, :] = layer_phase(
                        read, w_ref, s_ref, t_ref, q_lo, n, taps)
            else:
                for (r_out, q_lo, n, taps) in dec_plans[j]:
                    recon_ref[0, r_out, q_lo:q_lo + n, :] = layer_phase(
                        read, w_ref, s_ref, t_ref, q_lo, n, taps)

    # ------------------------------ specs & call ------------------------------
    def _resident(shape):
        nd = len(shape)
        return pl.BlockSpec(shape, lambda b, _n=nd: (0,) * _n)

    in_specs = [pl.BlockSpec((1, g0, q0, c0), lambda b: (b, 0, 0, 0))]
    for (cin, cout, k, s, p) in encoder_config:
        in_specs += [_resident((k, cin, cout)), _resident((1, cout)), _resident((1, cout))]
    in_specs += [_resident((enc_out_ch, EMBEDDING_DIM)), _resident((1, EMBEDDING_DIM)),
                 _resident((CODEBOOK_PAD, EMBEDDING_DIM)), _resident((1, CODEBOOK_PAD)),
                 _resident((EMBEDDING_DIM, dec_in_ch)), _resident((1, dec_in_ch))]
    for (cin, cout, k, s, p) in decoder_config:
        in_specs += [_resident((k, cin, cout)), _resident((1, cout)), _resident((1, cout))]

    out_specs = (pl.BlockSpec((1, f_fin, q_fin, c_fin), lambda b: (b, 0, 0, 0)),
                 pl.BlockSpec((1, 1, 128), lambda b: (b, 0, 0)))
    out_shape = (jax.ShapeDtypeStruct((batch, f_fin, q_fin, c_fin), jnp.float32),
                 jax.ShapeDtypeStruct((batch, 1, 128), jnp.float32))

    scratch_shapes = ([pltpu.VMEM((bspec[0], bspec[1], bspec[3]), jnp.float32)
                       for bspec in enc_buf[1:]]
                      + [pltpu.VMEM((bspec[0], bspec[1], bspec[3]), jnp.float32)
                         for bspec in dec_buf])

    fused = pl.pallas_call(
        kernel,
        grid=(batch,),
        out_shape=out_shape,
        in_specs=in_specs,
        out_specs=out_specs,
        scratch_shapes=scratch_shapes,
        compiler_params=pltpu.CompilerParams(
            dimension_semantics=("parallel",),
            vmem_limit_bytes=VMEM_LIMIT_BYTES),
    )

    def _fold_affine(layer, cout, has_bn):
        if has_bn:
            scale = layer["gamma"] / jnp.sqrt(layer["rv"] + BN_EPS)
            shift = layer["beta"] - layer["rm"] * scale
        else:
            scale = jnp.ones((cout,), jnp.float32)
            shift = jnp.zeros((cout,), jnp.float32)
        return (scale.reshape(1, cout).astype(jnp.float32),
                (layer["b"] * scale + shift).reshape(1, cout).astype(jnp.float32))

    def forward(params, x):
        # x: (batch, dim_feat, time) -> channels-last once at the boundary.
        xcl = jnp.transpose(x, (0, 2, 1)).astype(jnp.float32)         # (B, T0, C0)
        pad_front = m0 * g0
        pad_back = q0 * g0 - pad_front - t0
        xp = jnp.pad(xcl, ((0, 0), (pad_front, pad_back), (0, 0)))
        xg = xp.reshape(batch, q0, g0, c0).transpose(0, 2, 1, 3)      # (B, G0, Q0, C0)

        inputs = [xg]
        for i, layer in enumerate(params["enc"]):
            cout = encoder_config[i][1]
            wk = jnp.transpose(layer["w"], (2, 1, 0)).astype(MATMUL_DTYPE)   # (K, Cin, Cout)
            inputs += [wk, *_fold_affine(layer, cout, i < n_enc - 1)]

        cb = params["codebook"].astype(jnp.float32)
        e_pad = jnp.pad(cb, ((0, CODEBOOK_PAD - NUM_EMBEDDINGS), (0, 0)))
        esq = jnp.pad(jnp.sum(cb * cb, axis=1),
                      (0, CODEBOOK_PAD - NUM_EMBEDDINGS),
                      constant_values=1e30).reshape(1, CODEBOOK_PAD)         # sentinel pad
        inputs += [jnp.transpose(params["lxm_w"]).astype(MATMUL_DTYPE),
                   params["lxm_b"].reshape(1, EMBEDDING_DIM).astype(jnp.float32),
                   e_pad, esq,
                   jnp.transpose(params["dec_embed_w"]).astype(MATMUL_DTYPE),
                   params["dec_embed_b"].reshape(1, dec_in_ch).astype(jnp.float32)]

        for j, layer in enumerate(params["dec"]):
            cout = decoder_config[j][1]
            wk = jnp.transpose(layer["w"], (2, 0, 1)).astype(MATMUL_DTYPE)   # (K, Cin, Cout)
            inputs += [wk, *_fold_affine(layer, cout, j < n_dec - 1)]

        recon_g, loss_part = fused(*inputs)
        y = recon_g.transpose(0, 2, 1, 3).reshape(batch, q_fin * f_fin, c_fin)[:, :t_fin, :]
        gt_recon = jnp.transpose(y, (0, 2, 1))                          # (B, C, T)
        e_loss = (COMMITMENT_COST * jnp.sum(loss_part[:, 0, 0])
                  / (batch * t_e * EMBEDDING_DIM))
        return e_loss, gt_recon

    return forward


# --------------------------------- parameters --------------------------------------

def _xavier_uniform(key, out_f, in_f):
    bound = (6.0 / (in_f + out_f)) ** 0.5
    return jax.random.uniform(key, (out_f, in_f), jnp.float32, -bound, bound)


def _uniform(key, shape, fan_in):
    bound = 1.0 / (fan_in ** 0.5)
    return jax.random.uniform(key, shape, jnp.float32, -bound, bound)


def _bn_identity(c):
    return dict(gamma=jnp.ones((c,), jnp.float32), beta=jnp.zeros((c,), jnp.float32),
                rm=jnp.zeros((c,), jnp.float32), rv=jnp.ones((c,), jnp.float32))


def init_params(key, encoder_config, decoder_config):
    keys = iter(jax.random.split(key, 4 * (len(encoder_config) + len(decoder_config)) + 8))
    params = {"enc": [], "dec": []}
    for i, (cin, cout, k, s, p) in enumerate(encoder_config):
        layer = {"w": _uniform(next(keys), (cout, cin, k), cin * k),
                 "b": _uniform(next(keys), (cout,), cin * k)}
        if i < len(encoder_config) - 1:
            layer.update(_bn_identity(cout))
        params["enc"].append(layer)
    for i, (cin, cout, k, s, p) in enumerate(decoder_config):
        layer = {"w": _uniform(next(keys), (cin, cout, k), cout * k),
                 "b": _uniform(next(keys), (cout,), cout * k)}
        if i < len(decoder_config) - 1:
            layer.update(_bn_identity(cout))
        params["dec"].append(layer)
    enc_out = encoder_config[-1][1]
    dec_in = decoder_config[0][0]
    params["lxm_w"] = _xavier_uniform(next(keys), EMBEDDING_DIM, enc_out)       # (192, enc_out)
    params["lxm_b"] = jnp.zeros((EMBEDDING_DIM,), jnp.float32)
    params["dec_embed_w"] = _xavier_uniform(next(keys), dec_in, EMBEDDING_DIM)  # (dec_in, 192)
    params["dec_embed_b"] = jnp.zeros((dec_in,), jnp.float32)
    params["codebook"] = jax.random.normal(next(keys), (NUM_EMBEDDINGS, EMBEDDING_DIM),
                                           jnp.float32)
    return params


# ------------------------------------- main -----------------------------------------

if __name__ == "__main__":
    # small, self-consistent configs: [in_ch, out_ch, kernel, stride, padding]
    encoder_config = [[8, 16, 4, 2, 1], [16, 32, 4, 2, 1]]   # T: 16 -> 8 -> 4
    decoder_config = [[32, 16, 4, 2, 1], [16, 8, 4, 2, 1]]   # T: 4 -> 8 -> 16
    batch, dim_feat, time = 2, 8, 16

    key = jax.random.PRNGKey(0)
    pkey, xkey = jax.random.split(key)
    params = init_params(pkey, encoder_config, decoder_config)
    x = jax.random.normal(xkey, (batch, dim_feat, time), jnp.float32)

    forward = build_vqvae1d_forward(encoder_config, decoder_config, batch, time)
    fwd = jax.jit(forward)
    e_loss, gt_recon = fwd(params, x)
    jax.block_until_ready((e_loss, gt_recon))

    assert gt_recon.shape == (batch, dim_feat, time), gt_recon.shape
    assert e_loss.shape == (), e_loss.shape
    assert bool(jnp.isfinite(e_loss)) and bool(jnp.all(jnp.isfinite(gt_recon)))
    print("KERNEL_OK")
</pallas_src>

<mosaic_0001>
module attributes {stable_mosaic.version = 11 : i64} {
  func.func @kernel(%arg0: i32, %arg1: memref<1x4x6x8xf32, #tpu.memory_space<vmem>>, %arg2: memref<4x8x16xbf16, #tpu.memory_space<vmem>>, %arg3: memref<1x16xf32, #tpu.memory_space<vmem>>, %arg4: memref<1x16xf32, #tpu.memory_space<vmem>>, %arg5: memref<4x16x32xbf16, #tpu.memory_space<vmem>>, %arg6: memref<1x32xf32, #tpu.memory_space<vmem>>, %arg7: memref<1x32xf32, #tpu.memory_space<vmem>>, %arg8: memref<32x192xbf16, #tpu.memory_space<vmem>>, %arg9: memref<1x192xf32, #tpu.memory_space<vmem>>, %arg10: memref<128x192xf32, #tpu.memory_space<vmem>>, %arg11: memref<1x128xf32, #tpu.memory_space<vmem>>, %arg12: memref<192x32xbf16, #tpu.memory_space<vmem>>, %arg13: memref<1x32xf32, #tpu.memory_space<vmem>>, %arg14: memref<4x32x16xbf16, #tpu.memory_space<vmem>>, %arg15: memref<1x16xf32, #tpu.memory_space<vmem>>, %arg16: memref<1x16xf32, #tpu.memory_space<vmem>>, %arg17: memref<4x16x8xbf16, #tpu.memory_space<vmem>>, %arg18: memref<1x8xf32, #tpu.memory_space<vmem>>, %arg19: memref<1x8xf32, #tpu.memory_space<vmem>>, %arg20: memref<1x4x4x8xf32, #tpu.memory_space<vmem>>, %arg21: memref<1x1x128xf32, #tpu.memory_space<vmem>>, %arg22: memref<2x6x16xf32, #tpu.memory_space<vmem>>, %arg23: memref<1x6x32xf32, #tpu.memory_space<vmem>>, %arg24: memref<2x6x16xf32, #tpu.memory_space<vmem>>) attributes {dimension_semantics = [#tpu.dimension_semantics<parallel>], iteration_bounds = array<i64: 2>, scalar_prefetch = 0 : i64, scratch_operands = 3 : i64, tpu.core_type = #tpu.core_type<tc>, window_params = [{transform_indices = @transform_0, window_bounds = array<i64: 1, 4, 6, 8>}, {pipeline_mode = #tpu.pipeline_mode<synchronous>, transform_indices = @transform_1, window_bounds = array<i64: 4, 8, 16>}, {pipeline_mode = #tpu.pipeline_mode<synchronous>, transform_indices = @transform_2, window_bounds = array<i64: 1, 16>}, {pipeline_mode = #tpu.pipeline_mode<synchronous>, transform_indices = @transform_3, window_bounds = array<i64: 1, 16>}, {pipeline_mode = #tpu.pipeline_mode<synchronous>, transform_indices = @transform_4, window_bounds = array<i64: 4, 16, 32>}, {pipeline_mode = #tpu.pipeline_mode<synchronous>, transform_indices = @transform_5, window_bounds = array<i64: 1, 32>}, {pipeline_mode = #tpu.pipeline_mode<synchronous>, transform_indices = @transform_6, window_bounds = array<i64: 1, 32>}, {pipeline_mode = #tpu.pipeline_mode<synchronous>, transform_indices = @transform_7, window_bounds = array<i64: 32, 192>}, {pipeline_mode = #tpu.pipeline_mode<synchronous>, transform_indices = @transform_8, window_bounds = array<i64: 1, 192>}, {pipeline_mode = #tpu.pipeline_mode<synchronous>, transform_indices = @transform_9, window_bounds = array<i64: 128, 192>}, {pipeline_mode = #tpu.pipeline_mode<synchronous>, transform_indices = @transform_10, window_bounds = array<i64: 1, 128>}, {pipeline_mode = #tpu.pipeline_mode<synchronous>, transform_indices = @transform_11, window_bounds = array<i64: 192, 32>}, {pipeline_mode = #tpu.pipeline_mode<synchronous>, transform_indices = @transform_12, window_bounds = array<i64: 1, 32>}, {pipeline_mode = #tpu.pipeline_mode<synchronous>, transform_indices = @transform_13, window_bounds = array<i64: 4, 32, 16>}, {pipeline_mode = #tpu.pipeline_mode<synchronous>, transform_indices = @transform_14, window_bounds = array<i64: 1, 16>}, {pipeline_mode = #tpu.pipeline_mode<synchronous>, transform_indices = @transform_15, window_bounds = array<i64: 1, 16>}, {pipeline_mode = #tpu.pipeline_mode<synchronous>, transform_indices = @transform_16, window_bounds = array<i64: 4, 16, 8>}, {pipeline_mode = #tpu.pipeline_mode<synchronous>, transform_indices = @transform_17, window_bounds = array<i64: 1, 8>}, {pipeline_mode = #tpu.pipeline_mode<synchronous>, transform_indices = @transform_18, window_bounds = array<i64: 1, 8>}, {transform_indices = @transform_19, window_bounds = array<i64: 1, 4, 4, 8>}, {transform_indices = @transform_20, window_bounds = array<i64: 1, 1, 128>}]} {
    %cst = arith.constant 0.000000e+00 : f32
    %0 = vector.broadcast %cst : f32 to vector<2x6x16xf32>
    %c0 = arith.constant 0 : index
    %c0_0 = arith.constant 0 : index
    %c0_1 = arith.constant 0 : index
    %1 = vector.load %arg22[%c0, %c0_0, %c0_1] : memref<2x6x16xf32, #tpu.memory_space<vmem>>, vector<2x6x16xf32>
    tpu.vector_store %arg22[%c0, %c0_0, %c0_1], %0 {strides = array<i32>} : memref<2x6x16xf32, #tpu.memory_space<vmem>>, vector<2x6x16xf32>,
    %cst_2 = arith.constant 0.000000e+00 : f32
    %2 = vector.broadcast %cst_2 : f32 to vector<1x6x32xf32>
    %c0_3 = arith.constant 0 : index
    %c0_4 = arith.constant 0 : index
    %c0_5 = arith.constant 0 : index
    %3 = vector.load %arg23[%c0_3, %c0_4, %c0_5] : memref<1x6x32xf32, #tpu.memory_space<vmem>>, vector<1x6x32xf32>
    tpu.vector_store %arg23[%c0_3, %c0_4, %c0_5], %2 {strides = array<i32>} : memref<1x6x32xf32, #tpu.memory_space<vmem>>, vector<1x6x32xf32>,
    %cst_6 = arith.constant 0.000000e+00 : f32
    %4 = vector.broadcast %cst_6 : f32 to vector<2x6x16xf32>
    %c0_7 = arith.constant 0 : index
    %c0_8 = arith.constant 0 : index
    %c0_9 = arith.constant 0 : index
    %5 = vector.load %arg24[%c0_7, %c0_8, %c0_9] : memref<2x6x16xf32, #tpu.memory_space<vmem>>, vector<2x6x16xf32>
    tpu.vector_store %arg24[%c0_7, %c0_8, %c0_9], %4 {strides = array<i32>} : memref<2x6x16xf32, #tpu.memory_space<vmem>>, vector<2x6x16xf32>,
    %cst_10 = arith.constant 0.000000e+00 : f32
    %6 = vector.broadcast %cst_10 : f32 to vector<1x4x4x8xf32>
    %c0_11 = arith.constant 0 : index
    %c0_12 = arith.constant 0 : index
    %c0_13 = arith.constant 0 : index
    %c0_14 = arith.constant 0 : index
    %7 = vector.load %arg20[%c0_11, %c0_12, %c0_13, %c0_14] : memref<1x4x4x8xf32, #tpu.memory_space<vmem>>, vector<1x4x4x8xf32>
    tpu.vector_store %arg20[%c0_11, %c0_12, %c0_13, %c0_14], %6 {strides = array<i32>} : memref<1x4x4x8xf32, #tpu.memory_space<vmem>>, vector<1x4x4x8xf32>,
    %cst_15 = arith.constant 0.000000e+00 : f32
    %8 = vector.broadcast %cst_15 : f32 to vector<4x16xf32>
    %c0_16 = arith.constant 0 : index
    %c3 = arith.constant 3 : index
    %c0_17 = arith.constant 0 : index
    %c0_18 = arith.constant 0 : index
    %9 = vector.load %arg1[%c0_16, %c3, %c0_17, %c0_18] : memref<1x4x6x8xf32, #tpu.memory_space<vmem>>, vector<1x1x4x8xf32>
    %10 = vector.shape_cast %9 : vector<1x1x4x8xf32> to vector<4x8xf32>
    %11 = arith.truncf %10 : vector<4x8xf32> to vector<4x8xbf16>
    %c0_19 = arith.constant 0 : index
    %c0_20 = arith.constant 0 : index
    %c0_21 = arith.constant 0 : index
    %12 = vector.load %arg2[%c0_19, %c0_20, %c0_21] : memref<4x8x16xbf16, #tpu.memory_space<vmem>>, vector<1x8x16xbf16>
    %13 = vector.shape_cast %12 : vector<1x8x16xbf16> to vector<8x16xbf16>
    %cst_22 = arith.constant dense<0.000000e+00> : vector<4x16xf32>
    %14 = tpu.matmul %11, %13, %cst_22 {dimension_numbers = #tpu.dot_dimension_numbers<[1], [0], [0], [1], [0, 0, 1, 1], [], []>} : vector<4x8xbf16>, vector<8x16xbf16>, vector<4x16xf32> -> vector<4x16xf32>
    %15 = arith.addf %8, %14 : vector<4x16xf32>
    %c0_23 = arith.constant 0 : index
    %c0_24 = arith.constant 0 : index
    %c1 = arith.constant 1 : index
    %c0_25 = arith.constant 0 : index
    %16 = vector.load %arg1[%c0_23, %c0_24, %c1, %c0_25] : memref<1x4x6x8xf32, #tpu.memory_space<vmem>>, vector<1x1x4x8xf32>
    %17 = vector.shape_cast %16 : vector<1x1x4x8xf32> to vector<4x8xf32>
    %18 = arith.truncf %17 : vector<4x8xf32> to vector<4x8xbf16>
    %c1_26 = arith.constant 1 : index
    %c0_27 = arith.constant 0 : index
    %c0_28 = arith.constant 0 : index
    %19 = vector.load %arg2[%c1_26, %c0_27, %c0_28] : memref<4x8x16xbf16, #tpu.memory_space<vmem>>, vector<1x8x16xbf16>
    %20 = vector.shape_cast %19 : vector<1x8x16xbf16> to vector<8x16xbf16>
    %cst_29 = arith.constant dense<0.000000e+00> : vector<4x16xf32>
    %21 = tpu.matmul %18, %20, %cst_29 {dimension_numbers = #tpu.dot_dimension_numbers<[1], [0], [0], [1], [0, 0, 1, 1], [], []>} : vector<4x8xbf16>, vector<8x16xbf16>, vector<4x16xf32> -> vector<4x16xf32>
    %22 = arith.addf %15, %21 : vector<4x16xf32>
    %c0_30 = arith.constant 0 : index
    %c1_31 = arith.constant 1 : index
    %c1_32 = arith.constant 1 : index
    %c0_33 = arith.constant 0 : index
    %23 = vector.load %arg1[%c0_30, %c1_31, %c1_32, %c0_33] : memref<1x4x6x8xf32, #tpu.memory_space<vmem>>, vector<1x1x4x8xf32>
    %24 = vector.shape_cast %23 : vector<1x1x4x8xf32> to vector<4x8xf32>
    %25 = arith.truncf %24 : vector<4x8xf32> to vector<4x8xbf16>
    %c2 = arith.constant 2 : index
    %c0_34 = arith.constant 0 : index
    %c0_35 = arith.constant 0 : index
    %26 = vector.load %arg2[%c2, %c0_34, %c0_35] : memref<4x8x16xbf16, #tpu.memory_space<vmem>>, vector<1x8x16xbf16>
    %27 = vector.shape_cast %26 : vector<1x8x16xbf16> to vector<8x16xbf16>
    %cst_36 = arith.constant dense<0.000000e+00> : vector<4x16xf32>
    %28 = tpu.matmul %25, %27, %cst_36 {dimension_numbers = #tpu.dot_dimension_numbers<[1], [0], [0], [1], [0, 0, 1, 1], [], []>} : vector<4x8xbf16>, vector<8x16xbf16>, vector<4x16xf32> -> vector<4x16xf32>
    %29 = arith.addf %22, %28 : vector<4x16xf32>
    %c0_37 = arith.constant 0 : index
    %c2_38 = arith.constant 2 : index
    %c1_39 = arith.constant 1 : index
    %c0_40 = arith.constant 0 : index
    %30 = vector.load %arg1[%c0_37, %c2_38, %c1_39, %c0_40] : memref<1x4x6x8xf32, #tpu.memory_space<vmem>>, vector<1x1x4x8xf32>
    %31 = vector.shape_cast %30 : vector<1x1x4x8xf32> to vector<4x8xf32>
    %32 = arith.truncf %31 : vector<4x8xf32> to vector<4x8xbf16>
    %c3_41 = arith.constant 3 : index
    %c0_42 = arith.constant 0 : index
    %c0_43 = arith.constant 0 : index
    %33 = vector.load %arg2[%c3_41, %c0_42, %c0_43] : memref<4x8x16xbf16, #tpu.memory_space<vmem>>, vector<1x8x16xbf16>
    %34 = vector.shape_cast %33 : vector<1x8x16xbf16> to vector<8x16xbf16>
    %cst_44 = arith.constant dense<0.000000e+00> : vector<4x16xf32>
    %35 = tpu.matmul %32, %34, %cst_44 {dimension_numbers = #tpu.dot_dimension_numbers<[1], [0], [0], [1], [0, 0, 1, 1], [], []>} : vector<4x8xbf16>, vector<8x16xbf16>, vector<4x16xf32> -> vector<4x16xf32>
    %36 = arith.addf %29, %35 : vector<4x16xf32>
    %c0_45 = arith.constant 0 : index
    %c0_46 = arith.constant 0 : index
    %37 = vector.load %arg3[%c0_45, %c0_46] : memref<1x16xf32, #tpu.memory_space<vmem>>, vector<1x16xf32>
    %38 = vector.broadcast %37 : vector<1x16xf32> to vector<4x16xf32>
    %39 = arith.mulf %36, %38 : vector<4x16xf32>
    %c0_47 = arith.constant 0 : index
    %c0_48 = arith.constant 0 : index
    %40 = vector.load %arg4[%c0_47, %c0_48] : memref<1x16xf32, #tpu.memory_space<vmem>>, vector<1x16xf32>
    %41 = vector.broadcast %40 : vector<1x16xf32> to vector<4x16xf32>
    %42 = arith.addf %39, %41 : vector<4x16xf32>
    %c0_49 = arith.constant 0 : index
    %c1_50 = arith.constant 1 : index
    %c0_51 = arith.constant 0 : index
    %43 = vector.load %arg22[%c0_49, %c1_50, %c0_51] : memref<2x6x16xf32, #tpu.memory_space<vmem>>, vector<1x4x16xf32>
    %44 = vector.shape_cast %43 : vector<1x4x16xf32> to vector<4x16xf32>
    %45 = vector.shape_cast %42 : vector<4x16xf32> to vector<1x4x16xf32>
    tpu.vector_store %arg22[%c0_49, %c1_50, %c0_51], %45 {strides = array<i32>} : memref<2x6x16xf32, #tpu.memory_space<vmem>>, vector<1x4x16xf32>,
    %cst_52 = arith.constant 0.000000e+00 : f32
    %46 = vector.broadcast %cst_52 : f32 to vector<4x16xf32>
    %c0_53 = arith.constant 0 : index
    %c1_54 = arith.constant 1 : index
    %c1_55 = arith.constant 1 : index
    %c0_56 = arith.constant 0 : index
    %47 = vector.load %arg1[%c0_53, %c1_54, %c1_55, %c0_56] : memref<1x4x6x8xf32, #tpu.memory_space<vmem>>, vector<1x1x4x8xf32>
    %48 = vector.shape_cast %47 : vector<1x1x4x8xf32> to vector<4x8xf32>
    %49 = arith.truncf %48 : vector<4x8xf32> to vector<4x8xbf16>
    %c0_57 = arith.constant 0 : index
    %c0_58 = arith.constant 0 : index
    %c0_59 = arith.constant 0 : index
    %50 = vector.load %arg2[%c0_57, %c0_58, %c0_59] : memref<4x8x16xbf16, #tpu.memory_space<vmem>>, vector<1x8x16xbf16>
    %51 = vector.shape_cast %50 : vector<1x8x16xbf16> to vector<8x16xbf16>
    %cst_60 = arith.constant dense<0.000000e+00> : vector<4x16xf32>
    %52 = tpu.matmul %49, %51, %cst_60 {dimension_numbers = #tpu.dot_dimension_numbers<[1], [0], [0], [1], [0, 0, 1, 1], [], []>} : vector<4x8xbf16>, vector<8x16xbf16>, vector<4x16xf32> -> vector<4x16xf32>
    %53 = arith.addf %46, %52 : vector<4x16xf32>
    %c0_61 = arith.constant 0 : index
    %c2_62 = arith.constant 2 : index
    %c1_63 = arith.constant 1 : index
    %c0_64 = arith.constant 0 : index
    %54 = vector.load %arg1[%c0_61, %c2_62, %c1_63, %c0_64] : memref<1x4x6x8xf32, #tpu.memory_space<vmem>>, vector<1x1x4x8xf32>
    %55 = vector.shape_cast %54 : vector<1x1x4x8xf32> to vector<4x8xf32>
    %56 = arith.truncf %55 : vector<4x8xf32> to vector<4x8xbf16>
    %c1_65 = arith.constant 1 : index
    %c0_66 = arith.constant 0 : index
    %c0_67 = arith.constant 0 : index
    %57 = vector.load %arg2[%c1_65, %c0_66, %c0_67] : memref<4x8x16xbf16, #tpu.memory_space<vmem>>, vector<1x8x16xbf16>
    %58 = vector.shape_cast %57 : vector<1x8x16xbf16> to vector<8x16xbf16>
    %cst_68 = arith.constant dense<0.000000e+00> : vector<4x16xf32>
    %59 = tpu.matmul %56, %58, %cst_68 {dimension_numbers = #tpu.dot_dimension_numbers<[1], [0], [0], [1], [0, 0, 1, 1], [], []>} : vector<4x8xbf16>, vector<8x16xbf16>, vector<4x16xf32> -> vector<4x16xf32>
    %60 = arith.addf %53, %59 : vector<4x16xf32>
    %c0_69 = arith.constant 0 : index
    %c3_70 = arith.constant 3 : index
    %c1_71 = arith.constant 1 : index
    %c0_72 = arith.constant 0 : index
    %61 = vector.load %arg1[%c0_69, %c3_70, %c1_71, %c0_72] : memref<1x4x6x8xf32, #tpu.memory_space<vmem>>, vector<1x1x4x8xf32>
    %62 = vector.shape_cast %61 : vector<1x1x4x8xf32> to vector<4x8xf32>
    %63 = arith.truncf %62 : vector<4x8xf32> to vector<4x8xbf16>
    %c2_73 = arith.constant 2 : index
    %c0_74 = arith.constant 0 : index
    %c0_75 = arith.constant 0 : index
    %64 = vector.load %arg2[%c2_73, %c0_74, %c0_75] : memref<4x8x16xbf16, #tpu.memory_space<vmem>>, vector<1x8x16xbf16>
    %65 = vector.shape_cast %64 : vector<1x8x16xbf16> to vector<8x16xbf16>
    %cst_76 = arith.constant dense<0.000000e+00> : vector<4x16xf32>
    %66 = tpu.matmul %63, %65, %cst_76 {dimension_numbers = #tpu.dot_dimension_numbers<[1], [0], [0], [1], [0, 0, 1, 1], [], []>} : vector<4x8xbf16>, vector<8x16xbf16>, vector<4x16xf32> -> vector<4x16xf32>
    %67 = arith.addf %60, %66 : vector<4x16xf32>
    %c0_77 = arith.constant 0 : index
    %c0_78 = arith.constant 0 : index
    %c2_79 = arith.constant 2 : index
    %c0_80 = arith.constant 0 : index
    %68 = vector.load %arg1[%c0_77, %c0_78, %c2_79, %c0_80] : memref<1x4x6x8xf32, #tpu.memory_space<vmem>>, vector<1x1x4x8xf32>
    %69 = vector.shape_cast %68 : vector<1x1x4x8xf32> to vector<4x8xf32>
    %70 = arith.truncf %69 : vector<4x8xf32> to vector<4x8xbf16>
    %c3_81 = arith.constant 3 : index
    %c0_82 = arith.constant 0 : index
    %c0_83 = arith.constant 0 : index
    %71 = vector.load %arg2[%c3_81, %c0_82, %c0_83] : memref<4x8x16xbf16, #tpu.memory_space<vmem>>, vector<1x8x16xbf16>
    %72 = vector.shape_cast %71 : vector<1x8x16xbf16> to vector<8x16xbf16>
    %cst_84 = arith.constant dense<0.000000e+00> : vector<4x16xf32>
    %73 = tpu.matmul %70, %72, %cst_84 {dimension_numbers = #tpu.dot_dimension_numbers<[1], [0], [0], [1], [0, 0, 1, 1], [], []>} : vector<4x8xbf16>, vector<8x16xbf16>, vector<4x16xf32> -> vector<4x16xf32>
    %74 = arith.addf %67, %73 : vector<4x16xf32>
    %c0_85 = arith.constant 0 : index
    %c0_86 = arith.constant 0 : index
    %75 = vector.load %arg3[%c0_85, %c0_86] : memref<1x16xf32, #tpu.memory_space<vmem>>, vector<1x16xf32>
    %76 = vector.broadcast %75 : vector<1x16xf32> to vector<4x16xf32>
    %77 = arith.mulf %74, %76 : vector<4x16xf32>
    %c0_87 = arith.constant 0 : index
    %c0_88 = arith.constant 0 : index
    %78 = vector.load %arg4[%c0_87, %c0_88] : memref<1x16xf32, #tpu.memory_space<vmem>>, vector<1x16xf32>
    %79 = vector.broadcast %78 : vector<1x16xf32> to vector<4x16xf32>
    %80 = arith.addf %77, %79 : vector<4x16xf32>
    %c1_89 = arith.constant 1 : index
    %c1_90 = arith.constant 1 : index
    %c0_91 = arith.constant 0 : index
    %81 = vector.load %arg22[%c1_89, %c1_90, %c0_91] : memref<2x6x16xf32, #tpu.memory_space<vmem>>, vector<1x4x16xf32>
    %82 = vector.shape_cast %81 : vector<1x4x16xf32> to vector<4x16xf32>
    %83 = vector.shape_cast %80 : vector<4x16xf32> to vector<1x4x16xf32>
    tpu.vector_store %arg22[%c1_89, %c1_90, %c0_91], %83 {strides = array<i32>} : memref<2x6x16xf32, #tpu.memory_space<vmem>>, vector<1x4x16xf32>,
    %cst_92 = arith.constant 0.000000e+00 : f32
    %84 = vector.broadcast %cst_92 : f32 to vector<4x32xf32>
    %c1_93 = arith.constant 1 : index
    %c0_94 = arith.constant 0 : index
    %c0_95 = arith.constant 0 : index
    %85 = vector.load %arg22[%c1_93, %c0_94, %c0_95] : memref<2x6x16xf32, #tpu.memory_space<vmem>>, vector<1x4x16xf32>
    %86 = vector.shape_cast %85 : vector<1x4x16xf32> to vector<4x16xf32>
    %87 = arith.truncf %86 : vector<4x16xf32> to vector<4x16xbf16>
    %c0_96 = arith.constant 0 : index
    %c0_97 = arith.constant 0 : index
    %c0_98 = arith.constant 0 : index
    %88 = vector.load %arg5[%c0_96, %c0_97, %c0_98] : memref<4x16x32xbf16, #tpu.memory_space<vmem>>, vector<1x16x32xbf16>
    %89 = vector.shape_cast %88 : vector<1x16x32xbf16> to vector<16x32xbf16>
    %cst_99 = arith.constant dense<0.000000e+00> : vector<4x32xf32>
    %90 = tpu.matmul %87, %89, %cst_99 {dimension_numbers = #tpu.dot_dimension_numbers<[1], [0], [0], [1], [0, 0, 1, 1], [], []>} : vector<4x16xbf16>, vector<16x32xbf16>, vector<4x32xf32> -> vector<4x32xf32>
    %91 = arith.addf %84, %90 : vector<4x32xf32>
    %c0_100 = arith.constant 0 : index
    %c1_101 = arith.constant 1 : index
    %c0_102 = arith.constant 0 : index
    %92 = vector.load %arg22[%c0_100, %c1_101, %c0_102] : memref<2x6x16xf32, #tpu.memory_space<vmem>>, vector<1x4x16xf32>
    %93 = vector.shape_cast %92 : vector<1x4x16xf32> to vector<4x16xf32>
    %94 = arith.truncf %93 : vector<4x16xf32> to vector<4x16xbf16>
    %c1_103 = arith.constant 1 : index
    %c0_104 = arith.constant 0 : index
    %c0_105 = arith.constant 0 : index
    %95 = vector.load %arg5[%c1_103, %c0_104, %c0_105] : memref<4x16x32xbf16, #tpu.memory_space<vmem>>, vector<1x16x32xbf16>
    %96 = vector.shape_cast %95 : vector<1x16x32xbf16> to vector<16x32xbf16>
    %cst_106 = arith.constant dense<0.000000e+00> : vector<4x32xf32>
    %97 = tpu.matmul %94, %96, %cst_106 {dimension_numbers = #tpu.dot_dimension_numbers<[1], [0], [0], [1], [0, 0, 1, 1], [], []>} : vector<4x16xbf16>, vector<16x32xbf16>, vector<4x32xf32> -> vector<4x32xf32>
    %98 = arith.addf %91, %97 : vector<4x32xf32>
    %c1_107 = arith.constant 1 : index
    %c1_108 = arith.constant 1 : index
    %c0_109 = arith.constant 0 : index
    %99 = vector.load %arg22[%c1_107, %c1_108, %c0_109] : memref<2x6x16xf32, #tpu.memory_space<vmem>>, vector<1x4x16xf32>
    %100 = vector.shape_cast %99 : vector<1x4x16xf32> to vector<4x16xf32>
    %101 = arith.truncf %100 : vector<4x16xf32> to vector<4x16xbf16>
    %c2_110 = arith.constant 2 : index
    %c0_111 = arith.constant 0 : index
    %c0_112 = arith.constant 0 : index
    %102 = vector.load %arg5[%c2_110, %c0_111, %c0_112] : memref<4x16x32xbf16, #tpu.memory_space<vmem>>, vector<1x16x32xbf16>
    %103 = vector.shape_cast %102 : vector<1x16x32xbf16> to vector<16x32xbf16>
    %cst_113 = arith.constant dense<0.000000e+00> : vector<4x32xf32>
    %104 = tpu.matmul %101, %103, %cst_113 {dimension_numbers = #tpu.dot_dimension_numbers<[1], [0], [0], [1], [0, 0, 1, 1], [], []>} : vector<4x16xbf16>, vector<16x32xbf16>, vector<4x32xf32> -> vector<4x32xf32>
    %105 = arith.addf %98, %104 : vector<4x32xf32>
    %c0_114 = arith.constant 0 : index
    %c2_115 = arith.constant 2 : index
    %c0_116 = arith.constant 0 : index
    %106 = vector.load %arg22[%c0_114, %c2_115, %c0_116] : memref<2x6x16xf32, #tpu.memory_space<vmem>>, vector<1x4x16xf32>
    %107 = vector.shape_cast %106 : vector<1x4x16xf32> to vector<4x16xf32>
    %108 = arith.truncf %107 : vector<4x16xf32> to vector<4x16xbf16>
    %c3_117 = arith.constant 3 : index
    %c0_118 = arith.constant 0 : index
    %c0_119 = arith.constant 0 : index
    %109 = vector.load %arg5[%c3_117, %c0_118, %c0_119] : memref<4x16x32xbf16, #tpu.memory_space<vmem>>, vector<1x16x32xbf16>
    %110 = vector.shape_cast %109 : vector<1x16x32xbf16> to vector<16x32xbf16>
    %cst_120 = arith.constant dense<0.000000e+00> : vector<4x32xf32>
    %111 = tpu.matmul %108, %110, %cst_120 {dimension_numbers = #tpu.dot_dimension_numbers<[1], [0], [0], [1], [0, 0, 1, 1], [], []>} : vector<4x16xbf16>, vector<16x32xbf16>, vector<4x32xf32> -> vector<4x32xf32>
    %112 = arith.addf %105, %111 : vector<4x32xf32>
    %c0_121 = arith.constant 0 : index
    %c0_122 = arith.constant 0 : index
    %113 = vector.load %arg6[%c0_121, %c0_122] : memref<1x32xf32, #tpu.memory_space<vmem>>, vector<1x32xf32>
    %114 = vector.broadcast %113 : vector<1x32xf32> to vector<4x32xf32>
    %115 = arith.mulf %112, %114 : vector<4x32xf32>
    %c0_123 = arith.constant 0 : index
    %c0_124 = arith.constant 0 : index
    %116 = vector.load %arg7[%c0_123, %c0_124] : memref<1x32xf32, #tpu.memory_space<vmem>>, vector<1x32xf32>
    %117 = vector.broadcast %116 : vector<1x32xf32> to vector<4x32xf32>
    %118 = arith.addf %115, %117 : vector<4x32xf32>
    %119 = arith.truncf %118 : vector<4x32xf32> to vector<4x32xbf16>
    %c0_125 = arith.constant 0 : index
    %c0_126 = arith.constant 0 : index
    %120 = vector.load %arg8[%c0_125, %c0_126] : memref<32x192xbf16, #tpu.memory_space<vmem>>, vector<32x192xbf16>
    %cst_127 = arith.constant dense<0.000000e+00> : vector<4x192xf32>
    %121 = tpu.matmul %119, %120, %cst_127 {dimension_numbers = #tpu.dot_dimension_numbers<[1], [0], [0], [1], [0, 0, 1, 1], [], []>} : vector<4x32xbf16>, vector<32x192xbf16>, vector<4x192xf32> -> vector<4x192xf32>
    %c0_128 = arith.constant 0 : index
    %c0_129 = arith.constant 0 : index
    %122 = vector.load %arg9[%c0_128, %c0_129] : memref<1x192xf32, #tpu.memory_space<vmem>>, vector<1x192xf32>
    %123 = vector.broadcast %122 : vector<1x192xf32> to vector<4x192xf32>
    %124 = arith.addf %121, %123 : vector<4x192xf32>
    %c0_130 = arith.constant 0 : index
    %c0_131 = arith.constant 0 : index
    %125 = vector.load %arg10[%c0_130, %c0_131] : memref<128x192xf32, #tpu.memory_space<vmem>>, vector<128x192xf32>
    %cst_132 = arith.constant dense<0.000000e+00> : vector<4x128xf32>
    %126 = tpu.matmul %124, %125, %cst_132 {dimension_numbers = #tpu.dot_dimension_numbers<[1], [1], [0], [0], [0, 0, 1, 0], [], []>} : vector<4x192xf32>, vector<128x192xf32>, vector<4x128xf32> -> vector<4x128xf32>
    %c0_133 = arith.constant 0 : index
    %c0_134 = arith.constant 0 : index
    %127 = vector.load %arg11[%c0_133, %c0_134] : memref<1x128xf32, #tpu.memory_space<vmem>>, vector<1x128xf32>
    %cst_135 = arith.constant 2.000000e+00 : f32
    %128 = vector.broadcast %cst_135 : f32 to vector<4x128xf32>
    %129 = arith.mulf %128, %126 : vector<4x128xf32>
    %130 = vector.broadcast %127 : vector<1x128xf32> to vector<4x128xf32>
    %131 = arith.subf %130, %129 : vector<4x128xf32>
    %cst_136 = arith.constant dense<0x7F800000> : vector<4xf32>
    %132 = vector.multi_reduction <minimumf>, %131, %cst_136 [1] : vector<4x128xf32> to vector<4xf32>
    %133 = vector.shape_cast %132 : vector<4xf32> to vector<4x1xf32>
    %134 = tpu.iota {dimensions = array<i32: 1>} : vector<4x128xi32>
    %135 = vector.broadcast %133 : vector<4x1xf32> to vector<4x128xf32>
    %136 = arith.cmpf ole, %131, %135 : vector<4x128xf32>
    %c128_i32 = arith.constant 128 : i32
    %137 = vector.broadcast %c128_i32 : i32 to vector<4x128xi32>
    %138 = arith.select %136, %134, %137 : vector<4x128xi1>, vector<4x128xi32>
    %cst_137 = arith.constant dense<2147483647> : vector<4xi32>
    %139 = vector.multi_reduction <minsi>, %138, %cst_137 [1] : vector<4x128xi32> to vector<4xi32>
    %140 = vector.shape_cast %139 : vector<4xi32> to vector<4x1xi32>
    %141 = vector.broadcast %140 : vector<4x1xi32> to vector<4x128xi32>
    %142 = arith.cmpi eq, %134, %141 : vector<4x128xi32>
    %143 = arith.extui %142 : vector<4x128xi1> to vector<4x128xi32>
    %144 = arith.sitofp %143 : vector<4x128xi32> to vector<4x128xf32>
    %cst_138 = arith.constant dense<0.000000e+00> : vector<4x192xf32>
    %145 = tpu.matmul %144, %125, %cst_138 {dimension_numbers = #tpu.dot_dimension_numbers<[1], [0], [0], [1], [0, 0, 1, 1], [], []>} : vector<4x128xf32>, vector<128x192xf32>, vector<4x192xf32> -> vector<4x192xf32>
    %146 = arith.subf %145, %124 : vector<4x192xf32>
    %147 = arith.mulf %146, %146 : vector<4x192xf32>
    %148 = vector.shape_cast %147 : vector<4x192xf32> to vector<1x4x192xf32>
    %cst_139 = arith.constant dense<0.000000e+00> : vector<1xf32>
    %149 = vector.multi_reduction <add>, %148, %cst_139 [1, 2] : vector<1x4x192xf32> to vector<1xf32>
    %150 = vector.shape_cast %149 : vector<1xf32> to vector<1x1x1xf32>
    %151 = vector.extract %150[0, 0, 0] : f32 from vector<1x1x1xf32>
    %cst_140 = arith.constant 1.000000e+00 : f32
    %152 = vector.broadcast %cst_140 : f32 to vector<1x1x128xf32>
    %153 = vector.broadcast %151 : f32 to vector<1x1x128xf32>
    %154 = arith.mulf %153, %152 : vector<1x1x128xf32>
    %c0_141 = arith.constant 0 : index
    %c0_142 = arith.constant 0 : index
    %c0_143 = arith.constant 0 : index
    %155 = vector.load %arg21[%c0_141, %c0_142, %c0_143] : memref<1x1x128xf32, #tpu.memory_space<vmem>>, vector<1x1x128xf32>
    tpu.vector_store %arg21[%c0_141, %c0_142, %c0_143], %154 {strides = array<i32>} : memref<1x1x128xf32, #tpu.memory_space<vmem>>, vector<1x1x128xf32>,
    %156 = arith.truncf %145 : vector<4x192xf32> to vector<4x192xbf16>
    %c0_144 = arith.constant 0 : index
    %c0_145 = arith.constant 0 : index
    %157 = vector.load %arg12[%c0_144, %c0_145] : memref<192x32xbf16, #tpu.memory_space<vmem>>, vector<192x32xbf16>
    %cst_146 = arith.constant dense<0.000000e+00> : vector<4x32xf32>
    %158 = tpu.matmul %156, %157, %cst_146 {dimension_numbers = #tpu.dot_dimension_numbers<[1], [0], [0], [1], [0, 0, 1, 1], [], []>} : vector<4x192xbf16>, vector<192x32xbf16>, vector<4x32xf32> -> vector<4x32xf32>
    %c0_147 = arith.constant 0 : index
    %c0_148 = arith.constant 0 : index
    %159 = vector.load %arg13[%c0_147, %c0_148] : memref<1x32xf32, #tpu.memory_space<vmem>>, vector<1x32xf32>
    %160 = vector.broadcast %159 : vector<1x32xf32> to vector<4x32xf32>
    %161 = arith.addf %158, %160 : vector<4x32xf32>
    %c0_149 = arith.constant 0 : index
    %c1_150 = arith.constant 1 : index
    %c0_151 = arith.constant 0 : index
    %162 = vector.load %arg23[%c0_149, %c1_150, %c0_151] : memref<1x6x32xf32, #tpu.memory_space<vmem>>, vector<1x4x32xf32>
    %163 = vector.shape_cast %162 : vector<1x4x32xf32> to vector<4x32xf32>
    %164 = vector.shape_cast %161 : vector<4x32xf32> to vector<1x4x32xf32>
    tpu.vector_store %arg23[%c0_149, %c1_150, %c0_151], %164 {strides = array<i32>} : memref<1x6x32xf32, #tpu.memory_space<vmem>>, vector<1x4x32xf32>,
    %cst_152 = arith.constant 0.000000e+00 : f32
    %165 = vector.broadcast %cst_152 : f32 to vector<4x16xf32>
    %c0_153 = arith.constant 0 : index
    %c1_154 = arith.constant 1 : index
    %c0_155 = arith.constant 0 : index
    %166 = vector.load %arg23[%c0_153, %c1_154, %c0_155] : memref<1x6x32xf32, #tpu.memory_space<vmem>>, vector<1x4x32xf32>
    %167 = vector.shape_cast %166 : vector<1x4x32xf32> to vector<4x32xf32>
    %168 = arith.truncf %167 : vector<4x32xf32> to vector<4x32xbf16>
    %c1_156 = arith.constant 1 : index
    %c0_157 = arith.constant 0 : index
    %c0_158 = arith.constant 0 : index
    %169 = vector.load %arg14[%c1_156, %c0_157, %c0_158] : memref<4x32x16xbf16, #tpu.memory_space<vmem>>, vector<1x32x16xbf16>
    %170 = vector.shape_cast %169 : vector<1x32x16xbf16> to vector<32x16xbf16>
    %cst_159 = arith.constant dense<0.000000e+00> : vector<4x16xf32>
    %171 = tpu.matmul %168, %170, %cst_159 {dimension_numbers = #tpu.dot_dimension_numbers<[1], [0], [0], [1], [0, 0, 1, 1], [], []>} : vector<4x32xbf16>, vector<32x16xbf16>, vector<4x16xf32> -> vector<4x16xf32>
    %172 = arith.addf %165, %171 : vector<4x16xf32>
    %c0_160 = arith.constant 0 : index
    %c0_161 = arith.constant 0 : index
    %c0_162 = arith.constant 0 : index
    %173 = vector.load %arg23[%c0_160, %c0_161, %c0_162] : memref<1x6x32xf32, #tpu.memory_space<vmem>>, vector<1x4x32xf32>
    %174 = vector.shape_cast %173 : vector<1x4x32xf32> to vector<4x32xf32>
    %175 = arith.truncf %174 : vector<4x32xf32> to vector<4x32xbf16>
    %c3_163 = arith.constant 3 : index
    %c0_164 = arith.constant 0 : index
    %c0_165 = arith.constant 0 : index
    %176 = vector.load %arg14[%c3_163, %c0_164, %c0_165] : memref<4x32x16xbf16, #tpu.memory_space<vmem>>, vector<1x32x16xbf16>
    %177 = vector.shape_cast %176 : vector<1x32x16xbf16> to vector<32x16xbf16>
    %cst_166 = arith.constant dense<0.000000e+00> : vector<4x16xf32>
    %178 = tpu.matmul %175, %177, %cst_166 {dimension_numbers = #tpu.dot_dimension_numbers<[1], [0], [0], [1], [0, 0, 1, 1], [], []>} : vector<4x32xbf16>, vector<32x16xbf16>, vector<4x16xf32> -> vector<4x16xf32>
    %179 = arith.addf %172, %178 : vector<4x16xf32>
    %c0_167 = arith.constant 0 : index
    %c0_168 = arith.constant 0 : index
    %180 = vector.load %arg15[%c0_167, %c0_168] : memref<1x16xf32, #tpu.memory_space<vmem>>, vector<1x16xf32>
    %181 = vector.broadcast %180 : vector<1x16xf32> to vector<4x16xf32>
    %182 = arith.mulf %179, %181 : vector<4x16xf32>
    %c0_169 = arith.constant 0 : index
    %c0_170 = arith.constant 0 : index
    %183 = vector.load %arg16[%c0_169, %c0_170] : memref<1x16xf32, #tpu.memory_space<vmem>>, vector<1x16xf32>
    %184 = vector.broadcast %183 : vector<1x16xf32> to vector<4x16xf32>
    %185 = arith.addf %182, %184 : vector<4x16xf32>
    %c0_171 = arith.constant 0 : index
    %c1_172 = arith.constant 1 : index
    %c0_173 = arith.constant 0 : index
    %186 = vector.load %arg24[%c0_171, %c1_172, %c0_173] : memref<2x6x16xf32, #tpu.memory_space<vmem>>, vector<1x4x16xf32>
    %187 = vector.shape_cast %186 : vector<1x4x16xf32> to vector<4x16xf32>
    %188 = vector.shape_cast %185 : vector<4x16xf32> to vector<1x4x16xf32>
    tpu.vector_store %arg24[%c0_171, %c1_172, %c0_173], %188 {strides = array<i32>} : memref<2x6x16xf32, #tpu.memory_space<vmem>>, vector<1x4x16xf32>,
    %cst_174 = arith.constant 0.000000e+00 : f32
    %189 = vector.broadcast %cst_174 : f32 to vector<4x16xf32>
    %c0_175 = arith.constant 0 : index
    %c2_176 = arith.constant 2 : index
    %c0_177 = arith.constant 0 : index
    %190 = vector.load %arg23[%c0_175, %c2_176, %c0_177] : memref<1x6x32xf32, #tpu.memory_space<vmem>>, vector<1x4x32xf32>
    %191 = vector.shape_cast %190 : vector<1x4x32xf32> to vector<4x32xf32>
    %192 = arith.truncf %191 : vector<4x32xf32> to vector<4x32xbf16>
    %c0_178 = arith.constant 0 : index
    %c0_179 = arith.constant 0 : index
    %c0_180 = arith.constant 0 : index
    %193 = vector.load %arg14[%c0_178, %c0_179, %c0_180] : memref<4x32x16xbf16, #tpu.memory_space<vmem>>, vector<1x32x16xbf16>
    %194 = vector.shape_cast %193 : vector<1x32x16xbf16> to vector<32x16xbf16>
    %cst_181 = arith.constant dense<0.000000e+00> : vector<4x16xf32>
    %195 = tpu.matmul %192, %194, %cst_181 {dimension_numbers = #tpu.dot_dimension_numbers<[1], [0], [0], [1], [0, 0, 1, 1], [], []>} : vector<4x32xbf16>, vector<32x16xbf16>, vector<4x16xf32> -> vector<4x16xf32>
    %196 = arith.addf %189, %195 : vector<4x16xf32>
    %c0_182 = arith.constant 0 : index
    %c1_183 = arith.constant 1 : index
    %c0_184 = arith.constant 0 : index
    %197 = vector.load %arg23[%c0_182, %c1_183, %c0_184] : memref<1x6x32xf32, #tpu.memory_space<vmem>>, vector<1x4x32xf32>
    %198 = vector.shape_cast %197 : vector<1x4x32xf32> to vector<4x32xf32>
    %199 = arith.truncf %198 : vector<4x32xf32> to vector<4x32xbf16>
    %c2_185 = arith.constant 2 : index
    %c0_186 = arith.constant 0 : index
    %c0_187 = arith.constant 0 : index
    %200 = vector.load %arg14[%c2_185, %c0_186, %c0_187] : memref<4x32x16xbf16, #tpu.memory_space<vmem>>, vector<1x32x16xbf16>
    %201 = vector.shape_cast %200 : vector<1x32x16xbf16> to vector<32x16xbf16>
    %cst_188 = arith.constant dense<0.000000e+00> : vector<4x16xf32>
    %202 = tpu.matmul %199, %201, %cst_188 {dimension_numbers = #tpu.dot_dimension_numbers<[1], [0], [0], [1], [0, 0, 1, 1], [], []>} : vector<4x32xbf16>, vector<32x16xbf16>, vector<4x16xf32> -> vector<4x16xf32>
    %203 = arith.addf %196, %202 : vector<4x16xf32>
    %c0_189 = arith.constant 0 : index
    %c0_190 = arith.constant 0 : index
    %204 = vector.load %arg15[%c0_189, %c0_190] : memref<1x16xf32, #tpu.memory_space<vmem>>, vector<1x16xf32>
    %205 = vector.broadcast %204 : vector<1x16xf32> to vector<4x16xf32>
    %206 = arith.mulf %203, %205 : vector<4x16xf32>
    %c0_191 = arith.constant 0 : index
    %c0_192 = arith.constant 0 : index
    %207 = vector.load %arg16[%c0_191, %c0_192] : memref<1x16xf32, #tpu.memory_space<vmem>>, vector<1x16xf32>
    %208 = vector.broadcast %207 : vector<1x16xf32> to vector<4x16xf32>
    %209 = arith.addf %206, %208 : vector<4x16xf32>
    %c1_193 = arith.constant 1 : index
    %c1_194 = arith.constant 1 : index
    %c0_195 = arith.constant 0 : index
    %210 = vector.load %arg24[%c1_193, %c1_194, %c0_195] : memref<2x6x16xf32, #tpu.memory_space<vmem>>, vector<1x4x16xf32>
    %211 = vector.shape_cast %210 : vector<1x4x16xf32> to vector<4x16xf32>
    %212 = vector.shape_cast %209 : vector<4x16xf32> to vector<1x4x16xf32>
    tpu.vector_store %arg24[%c1_193, %c1_194, %c0_195], %212 {strides = array<i32>} : memref<2x6x16xf32, #tpu.memory_space<vmem>>, vector<1x4x16xf32>,
    %cst_196 = arith.constant 0.000000e+00 : f32
    %213 = vector.broadcast %cst_196 : f32 to vector<4x8xf32>
    %c0_197 = arith.constant 0 : index
    %c1_198 = arith.constant 1 : index
    %c0_199 = arith.constant 0 : index
    %214 = vector.load %arg24[%c0_197, %c1_198, %c0_199] : memref<2x6x16xf32, #tpu.memory_space<vmem>>, vector<1x4x16xf32>
    %215 = vector.shape_cast %214 : vector<1x4x16xf32> to vector<4x16xf32>
    %216 = arith.truncf %215 : vector<4x16xf32> to vector<4x16xbf16>
    %c1_200 = arith.constant 1 : index
    %c0_201 = arith.constant 0 : index
    %c0_202 = arith.constant 0 : index
    %217 = vector.load %arg17[%c1_200, %c0_201, %c0_202] : memref<4x16x8xbf16, #tpu.memory_space<vmem>>, vector<1x16x8xbf16>
    %218 = vector.shape_cast %217 : vector<1x16x8xbf16> to vector<16x8xbf16>
    %cst_203 = arith.constant dense<0.000000e+00> : vector<4x8xf32>
    %219 = tpu.matmul %216, %218, %cst_203 {dimension_numbers = #tpu.dot_dimension_numbers<[1], [0], [0], [1], [0, 0, 1, 1], [], []>} : vector<4x16xbf16>, vector<16x8xbf16>, vector<4x8xf32> -> vector<4x8xf32>
    %220 = arith.addf %213, %219 : vector<4x8xf32>
    %c1_204 = arith.constant 1 : index
    %c0_205 = arith.constant 0 : index
    %c0_206 = arith.constant 0 : index
    %221 = vector.load %arg24[%c1_204, %c0_205, %c0_206] : memref<2x6x16xf32, #tpu.memory_space<vmem>>, vector<1x4x16xf32>
    %222 = vector.shape_cast %221 : vector<1x4x16xf32> to vector<4x16xf32>
    %223 = arith.truncf %222 : vector<4x16xf32> to vector<4x16xbf16>
    %c3_207 = arith.constant 3 : index
    %c0_208 = arith.constant 0 : index
    %c0_209 = arith.constant 0 : index
    %224 = vector.load %arg17[%c3_207, %c0_208, %c0_209] : memref<4x16x8xbf16, #tpu.memory_space<vmem>>, vector<1x16x8xbf16>
    %225 = vector.shape_cast %224 : vector<1x16x8xbf16> to vector<16x8xbf16>
    %cst_210 = arith.constant dense<0.000000e+00> : vector<4x8xf32>
    %226 = tpu.matmul %223, %225, %cst_210 {dimension_numbers = #tpu.dot_dimension_numbers<[1], [0], [0], [1], [0, 0, 1, 1], [], []>} : vector<4x16xbf16>, vector<16x8xbf16>, vector<4x8xf32> -> vector<4x8xf32>
    %227 = arith.addf %220, %226 : vector<4x8xf32>
    %c0_211 = arith.constant 0 : index
    %c0_212 = arith.constant 0 : index
    %228 = vector.load %arg18[%c0_211, %c0_212] : memref<1x8xf32, #tpu.memory_space<vmem>>, vector<1x8xf32>
    %229 = vector.broadcast %228 : vector<1x8xf32> to vector<4x8xf32>
    %230 = arith.mulf %227, %229 : vector<4x8xf32>
    %c0_213 = arith.constant 0 : index
    %c0_214 = arith.constant 0 : index
    %231 = vector.load %arg19[%c0_213, %c0_214] : memref<1x8xf32, #tpu.memory_space<vmem>>, vector<1x8xf32>
    %232 = vector.broadcast %231 : vector<1x8xf32> to vector<4x8xf32>
    %233 = arith.addf %230, %232 : vector<4x8xf32>
    %c0_215 = arith.constant 0 : index
    %c0_216 = arith.constant 0 : index
    %c0_217 = arith.constant 0 : index
    %c0_218 = arith.constant 0 : index
    %234 = vector.load %arg20[%c0_215, %c0_216, %c0_217, %c0_218] : memref<1x4x4x8xf32, #tpu.memory_space<vmem>>, vector<1x1x4x8xf32>
    %235 = vector.shape_cast %234 : vector<1x1x4x8xf32> to vector<4x8xf32>
    %236 = vector.shape_cast %233 : vector<4x8xf32> to vector<1x1x4x8xf32>
    tpu.vector_store %arg20[%c0_215, %c0_216, %c0_217, %c0_218], %236 {strides = array<i32>} : memref<1x4x4x8xf32, #tpu.memory_space<vmem>>, vector<1x1x4x8xf32>,
    %cst_219 = arith.constant 0.000000e+00 : f32
    %237 = vector.broadcast %cst_219 : f32 to vector<4x8xf32>
    %c0_220 = arith.constant 0 : index
    %c1_221 = arith.constant 1 : index
    %c0_222 = arith.constant 0 : index
    %238 = vector.load %arg24[%c0_220, %c1_221, %c0_222] : memref<2x6x16xf32, #tpu.memory_space<vmem>>, vector<1x4x16xf32>
    %239 = vector.shape_cast %238 : vector<1x4x16xf32> to vector<4x16xf32>
    %240 = arith.truncf %239 : vector<4x16xf32> to vector<4x16xbf16>
    %c2_223 = arith.constant 2 : index
    %c0_224 = arith.constant 0 : index
    %c0_225 = arith.constant 0 : index
    %241 = vector.load %arg17[%c2_223, %c0_224, %c0_225] : memref<4x16x8xbf16, #tpu.memory_space<vmem>>, vector<1x16x8xbf16>
    %242 = vector.shape_cast %241 : vector<1x16x8xbf16> to vector<16x8xbf16>
    %cst_226 = arith.constant dense<0.000000e+00> : vector<4x8xf32>
    %243 = tpu.matmul %240, %242, %cst_226 {dimension_numbers = #tpu.dot_dimension_numbers<[1], [0], [0], [1], [0, 0, 1, 1], [], []>} : vector<4x16xbf16>, vector<16x8xbf16>, vector<4x8xf32> -> vector<4x8xf32>
    %244 = arith.addf %237, %243 : vector<4x8xf32>
    %c1_227 = arith.constant 1 : index
    %c1_228 = arith.constant 1 : index
    %c0_229 = arith.constant 0 : index
    %245 = vector.load %arg24[%c1_227, %c1_228, %c0_229] : memref<2x6x16xf32, #tpu.memory_space<vmem>>, vector<1x4x16xf32>
    %246 = vector.shape_cast %245 : vector<1x4x16xf32> to vector<4x16xf32>
    %247 = arith.truncf %246 : vector<4x16xf32> to vector<4x16xbf16>
    %c0_230 = arith.constant 0 : index
    %c0_231 = arith.constant 0 : index
    %c0_232 = arith.constant 0 : index
    %248 = vector.load %arg17[%c0_230, %c0_231, %c0_232] : memref<4x16x8xbf16, #tpu.memory_space<vmem>>, vector<1x16x8xbf16>
    %249 = vector.shape_cast %248 : vector<1x16x8xbf16> to vector<16x8xbf16>
    %cst_233 = arith.constant dense<0.000000e+00> : vector<4x8xf32>
    %250 = tpu.matmul %247, %249, %cst_233 {dimension_numbers = #tpu.dot_dimension_numbers<[1], [0], [0], [1], [0, 0, 1, 1], [], []>} : vector<4x16xbf16>, vector<16x8xbf16>, vector<4x8xf32> -> vector<4x8xf32>
    %251 = arith.addf %244, %250 : vector<4x8xf32>
    %c0_234 = arith.constant 0 : index
    %c0_235 = arith.constant 0 : index
    %252 = vector.load %arg18[%c0_234, %c0_235] : memref<1x8xf32, #tpu.memory_space<vmem>>, vector<1x8xf32>
    %253 = vector.broadcast %252 : vector<1x8xf32> to vector<4x8xf32>
    %254 = arith.mulf %251, %253 : vector<4x8xf32>
    %c0_236 = arith.constant 0 : index
    %c0_237 = arith.constant 0 : index
    %255 = vector.load %arg19[%c0_236, %c0_237] : memref<1x8xf32, #tpu.memory_space<vmem>>, vector<1x8xf32>
    %256 = vector.broadcast %255 : vector<1x8xf32> to vector<4x8xf32>
    %257 = arith.addf %254, %256 : vector<4x8xf32>
    %c0_238 = arith.constant 0 : index
    %c1_239 = arith.constant 1 : index
    %c0_240 = arith.constant 0 : index
    %c0_241 = arith.constant 0 : index
    %258 = vector.load %arg20[%c0_238, %c1_239, %c0_240, %c0_241] : memref<1x4x4x8xf32, #tpu.memory_space<vmem>>, vector<1x1x4x8xf32>
    %259 = vector.shape_cast %258 : vector<1x1x4x8xf32> to vector<4x8xf32>
    %260 = vector.shape_cast %257 : vector<4x8xf32> to vector<1x1x4x8xf32>
    tpu.vector_store %arg20[%c0_238, %c1_239, %c0_240, %c0_241], %260 {strides = array<i32>} : memref<1x4x4x8xf32, #tpu.memory_space<vmem>>, vector<1x1x4x8xf32>,
    %cst_242 = arith.constant 0.000000e+00 : f32
    %261 = vector.broadcast %cst_242 : f32 to vector<4x8xf32>
    %c0_243 = arith.constant 0 : index
    %c1_244 = arith.constant 1 : index
    %c0_245 = arith.constant 0 : index
    %262 = vector.load %arg24[%c0_243, %c1_244, %c0_245] : memref<2x6x16xf32, #tpu.memory_space<vmem>>, vector<1x4x16xf32>
    %263 = vector.shape_cast %262 : vector<1x4x16xf32> to vector<4x16xf32>
    %264 = arith.truncf %263 : vector<4x16xf32> to vector<4x16xbf16>
    %c3_246 = arith.constant 3 : index
    %c0_247 = arith.constant 0 : index
    %c0_248 = arith.constant 0 : index
    %265 = vector.load %arg17[%c3_246, %c0_247, %c0_248] : memref<4x16x8xbf16, #tpu.memory_space<vmem>>, vector<1x16x8xbf16>
    %266 = vector.shape_cast %265 : vector<1x16x8xbf16> to vector<16x8xbf16>
    %cst_249 = arith.constant dense<0.000000e+00> : vector<4x8xf32>
    %267 = tpu.matmul %264, %266, %cst_249 {dimension_numbers = #tpu.dot_dimension_numbers<[1], [0], [0], [1], [0, 0, 1, 1], [], []>} : vector<4x16xbf16>, vector<16x8xbf16>, vector<4x8xf32> -> vector<4x8xf32>
    %268 = arith.addf %261, %267 : vector<4x8xf32>
    %c1_250 = arith.constant 1 : index
    %c1_251 = arith.constant 1 : index
    %c0_252 = arith.constant 0 : index
    %269 = vector.load %arg24[%c1_250, %c1_251, %c0_252] : memref<2x6x16xf32, #tpu.memory_space<vmem>>, vector<1x4x16xf32>
    %270 = vector.shape_cast %269 : vector<1x4x16xf32> to vector<4x16xf32>
    %271 = arith.truncf %270 : vector<4x16xf32> to vector<4x16xbf16>
    %c1_253 = arith.constant 1 : index
    %c0_254 = arith.constant 0 : index
    %c0_255 = arith.constant 0 : index
    %272 = vector.load %arg17[%c1_253, %c0_254, %c0_255] : memref<4x16x8xbf16, #tpu.memory_space<vmem>>, vector<1x16x8xbf16>
    %273 = vector.shape_cast %272 : vector<1x16x8xbf16> to vector<16x8xbf16>
    %cst_256 = arith.constant dense<0.000000e+00> : vector<4x8xf32>
    %274 = tpu.matmul %271, %273, %cst_256 {dimension_numbers = #tpu.dot_dimension_numbers<[1], [0], [0], [1], [0, 0, 1, 1], [], []>} : vector<4x16xbf16>, vector<16x8xbf16>, vector<4x8xf32> -> vector<4x8xf32>
    %275 = arith.addf %268, %274 : vector<4x8xf32>
    %c0_257 = arith.constant 0 : index
    %c0_258 = arith.constant 0 : index
    %276 = vector.load %arg18[%c0_257, %c0_258] : memref<1x8xf32, #tpu.memory_space<vmem>>, vector<1x8xf32>
    %277 = vector.broadcast %276 : vector<1x8xf32> to vector<4x8xf32>
    %278 = arith.mulf %275, %277 : vector<4x8xf32>
    %c0_259 = arith.constant 0 : index
    %c0_260 = arith.constant 0 : index
    %279 = vector.load %arg19[%c0_259, %c0_260] : memref<1x8xf32, #tpu.memory_space<vmem>>, vector<1x8xf32>
    %280 = vector.broadcast %279 : vector<1x8xf32> to vector<4x8xf32>
    %281 = arith.addf %278, %280 : vector<4x8xf32>
    %c0_261 = arith.constant 0 : index
    %c2_262 = arith.constant 2 : index
    %c0_263 = arith.constant 0 : index
    %c0_264 = arith.constant 0 : index
    %282 = vector.load %arg20[%c0_261, %c2_262, %c0_263, %c0_264] : memref<1x4x4x8xf32, #tpu.memory_space<vmem>>, vector<1x1x4x8xf32>
    %283 = vector.shape_cast %282 : vector<1x1x4x8xf32> to vector<4x8xf32>
    %284 = vector.shape_cast %281 : vector<4x8xf32> to vector<1x1x4x8xf32>
    tpu.vector_store %arg20[%c0_261, %c2_262, %c0_263, %c0_264], %284 {strides = array<i32>} : memref<1x4x4x8xf32, #tpu.memory_space<vmem>>, vector<1x1x4x8xf32>,
    %cst_265 = arith.constant 0.000000e+00 : f32
    %285 = vector.broadcast %cst_265 : f32 to vector<4x8xf32>
    %c0_266 = arith.constant 0 : index
    %c2_267 = arith.constant 2 : index
    %c0_268 = arith.constant 0 : index
    %286 = vector.load %arg24[%c0_266, %c2_267, %c0_268] : memref<2x6x16xf32, #tpu.memory_space<vmem>>, vector<1x4x16xf32>
    %287 = vector.shape_cast %286 : vector<1x4x16xf32> to vector<4x16xf32>
    %288 = arith.truncf %287 : vector<4x16xf32> to vector<4x16xbf16>
    %c0_269 = arith.constant 0 : index
    %c0_270 = arith.constant 0 : index
    %c0_271 = arith.constant 0 : index
    %289 = vector.load %arg17[%c0_269, %c0_270, %c0_271] : memref<4x16x8xbf16, #tpu.memory_space<vmem>>, vector<1x16x8xbf16>
    %290 = vector.shape_cast %289 : vector<1x16x8xbf16> to vector<16x8xbf16>
    %cst_272 = arith.constant dense<0.000000e+00> : vector<4x8xf32>
    %291 = tpu.matmul %288, %290, %cst_272 {dimension_numbers = #tpu.dot_dimension_numbers<[1], [0], [0], [1], [0, 0, 1, 1], [], []>} : vector<4x16xbf16>, vector<16x8xbf16>, vector<4x8xf32> -> vector<4x8xf32>
    %292 = arith.addf %285, %291 : vector<4x8xf32>
    %c1_273 = arith.constant 1 : index
    %c1_274 = arith.constant 1 : index
    %c0_275 = arith.constant 0 : index
    %293 = vector.load %arg24[%c1_273, %c1_274, %c0_275] : memref<2x6x16xf32, #tpu.memory_space<vmem>>, vector<1x4x16xf32>
    %294 = vector.shape_cast %293 : vector<1x4x16xf32> to vector<4x16xf32>
    %295 = arith.truncf %294 : vector<4x16xf32> to vector<4x16xbf16>
    %c2_276 = arith.constant 2 : index
    %c0_277 = arith.constant 0 : index
    %c0_278 = arith.constant 0 : index
    %296 = vector.load %arg17[%c2_276, %c0_277, %c0_278] : memref<4x16x8xbf16, #tpu.memory_space<vmem>>, vector<1x16x8xbf16>
    %297 = vector.shape_cast %296 : vector<1x16x8xbf16> to vector<16x8xbf16>
    %cst_279 = arith.constant dense<0.000000e+00> : vector<4x8xf32>
    %298 = tpu.matmul %295, %297, %cst_279 {dimension_numbers = #tpu.dot_dimension_numbers<[1], [0], [0], [1], [0, 0, 1, 1], [], []>} : vector<4x16xbf16>, vector<16x8xbf16>, vector<4x8xf32> -> vector<4x8xf32>
    %299 = arith.addf %292, %298 : vector<4x8xf32>
    %c0_280 = arith.constant 0 : index
    %c0_281 = arith.constant 0 : index
    %300 = vector.load %arg18[%c0_280, %c0_281] : memref<1x8xf32, #tpu.memory_space<vmem>>, vector<1x8xf32>
    %301 = vector.broadcast %300 : vector<1x8xf32> to vector<4x8xf32>
    %302 = arith.mulf %299, %301 : vector<4x8xf32>
    %c0_282 = arith.constant 0 : index
    %c0_283 = arith.constant 0 : index
    %303 = vector.load %arg19[%c0_282, %c0_283] : memref<1x8xf32, #tpu.memory_space<vmem>>, vector<1x8xf32>
    %304 = vector.broadcast %303 : vector<1x8xf32> to vector<4x8xf32>
    %305 = arith.addf %302, %304 : vector<4x8xf32>
    %c0_284 = arith.constant 0 : index
    %c3_285 = arith.constant 3 : index
    %c0_286 = arith.constant 0 : index
    %c0_287 = arith.constant 0 : index
    %306 = vector.load %arg20[%c0_284, %c3_285, %c0_286, %c0_287] : memref<1x4x4x8xf32, #tpu.memory_space<vmem>>, vector<1x1x4x8xf32>
    %307 = vector.shape_cast %306 : vector<1x1x4x8xf32> to vector<4x8xf32>
    %308 = vector.shape_cast %305 : vector<4x8xf32> to vector<1x1x4x8xf32>
    tpu.vector_store %arg20[%c0_284, %c3_285, %c0_286, %c0_287], %308 {strides = array<i32>} : memref<1x4x4x8xf32, #tpu.memory_space<vmem>>, vector<1x1x4x8xf32>,
    return
  }
  func.func @transform_0(%arg0: i32) -> (i32, i32, i32, i32) {
    %c0_i32 = arith.constant 0 : i32
    %c0_i32_0 = arith.constant 0 : i32
    %c0_i32_1 = arith.constant 0 : i32
    %c0_i32_2 = arith.constant 0 : i32
    return %arg0, %c0_i32, %c0_i32_0, %c0_i32_1 : i32, i32, i32, i32
  }
  func.func @transform_1(%arg0: i32) -> (i32, i32, i32) {
    %c0_i32 = arith.constant 0 : i32
    %c0_i32_0 = arith.constant 0 : i32
    %c0_i32_1 = arith.constant 0 : i32
    %c0_i32_2 = arith.constant 0 : i32
    return %c0_i32, %c0_i32_0, %c0_i32_1 : i32, i32, i32
  }
  func.func @transform_2(%arg0: i32) -> (i32, i32) {
    %c0_i32 = arith.constant 0 : i32
    %c0_i32_0 = arith.constant 0 : i32
    %c0_i32_1 = arith.constant 0 : i32
    return %c0_i32, %c0_i32_0 : i32, i32
  }
  func.func @transform_3(%arg0: i32) -> (i32, i32) {
    %c0_i32 = arith.constant 0 : i32
    %c0_i32_0 = arith.constant 0 : i32
    %c0_i32_1 = arith.constant 0 : i32
    return %c0_i32, %c0_i32_0 : i32, i32
  }
  func.func @transform_4(%arg0: i32) -> (i32, i32, i32) {
    %c0_i32 = arith.constant 0 : i32
    %c0_i32_0 = arith.constant 0 : i32
    %c0_i32_1 = arith.constant 0 : i32
    %c0_i32_2 = arith.constant 0 : i32
    return %c0_i32, %c0_i32_0, %c0_i32_1 : i32, i32, i32
  }
  func.func @transform_5(%arg0: i32) -> (i32, i32) {
    %c0_i32 = arith.constant 0 : i32
    %c0_i32_0 = arith.constant 0 : i32
    %c0_i32_1 = arith.constant 0 : i32
    return %c0_i32, %c0_i32_0 : i32, i32
  }
  func.func @transform_6(%arg0: i32) -> (i32, i32) {
    %c0_i32 = arith.constant 0 : i32
    %c0_i32_0 = arith.constant 0 : i32
    %c0_i32_1 = arith.constant 0 : i32
    return %c0_i32, %c0_i32_0 : i32, i32
  }
  func.func @transform_7(%arg0: i32) -> (i32, i32) {
    %c0_i32 = arith.constant 0 : i32
    %c0_i32_0 = arith.constant 0 : i32
    %c0_i32_1 = arith.constant 0 : i32
    return %c0_i32, %c0_i32_0 : i32, i32
  }
  func.func @transform_8(%arg0: i32) -> (i32, i32) {
    %c0_i32 = arith.constant 0 : i32
    %c0_i32_0 = arith.constant 0 : i32
    %c0_i32_1 = arith.constant 0 : i32
    return %c0_i32, %c0_i32_0 : i32, i32
  }
  func.func @transform_9(%arg0: i32) -> (i32, i32) {
    %c0_i32 = arith.constant 0 : i32
    %c0_i32_0 = arith.constant 0 : i32
    %c0_i32_1 = arith.constant 0 : i32
    return %c0_i32, %c0_i32_0 : i32, i32
  }
  func.func @transform_10(%arg0: i32) -> (i32, i32) {
    %c0_i32 = arith.constant 0 : i32
    %c0_i32_0 = arith.constant 0 : i32
    %c0_i32_1 = arith.constant 0 : i32
    return %c0_i32, %c0_i32_0 : i32, i32
  }
  func.func @transform_11(%arg0: i32) -> (i32, i32) {
    %c0_i32 = arith.constant 0 : i32
    %c0_i32_0 = arith.constant 0 : i32
    %c0_i32_1 = arith.constant 0 : i32
    return %c0_i32, %c0_i32_0 : i32, i32
  }
  func.func @transform_12(%arg0: i32) -> (i32, i32) {
    %c0_i32 = arith.constant 0 : i32
    %c0_i32_0 = arith.constant 0 : i32
    %c0_i32_1 = arith.constant 0 : i32
    return %c0_i32, %c0_i32_0 : i32, i32
  }
  func.func @transform_13(%arg0: i32) -> (i32, i32, i32) {
    %c0_i32 = arith.constant 0 : i32
    %c0_i32_0 = arith.constant 0 : i32
    %c0_i32_1 = arith.constant 0 : i32
    %c0_i32_2 = arith.constant 0 : i32
    return %c0_i32, %c0_i32_0, %c0_i32_1 : i32, i32, i32
  }
  func.func @transform_14(%arg0: i32) -> (i32, i32) {
    %c0_i32 = arith.constant 0 : i32
    %c0_i32_0 = arith.constant 0 : i32
    %c0_i32_1 = arith.constant 0 : i32
    return %c0_i32, %c0_i32_0 : i32, i32
  }
  func.func @transform_15(%arg0: i32) -> (i32, i32) {
    %c0_i32 = arith.constant 0 : i32
    %c0_i32_0 = arith.constant 0 : i32
    %c0_i32_1 = arith.constant 0 : i32
    return %c0_i32, %c0_i32_0 : i32, i32
  }
  func.func @transform_16(%arg0: i32) -> (i32, i32, i32) {
    %c0_i32 = arith.constant 0 : i32
    %c0_i32_0 = arith.constant 0 : i32
    %c0_i32_1 = arith.constant 0 : i32
    %c0_i32_2 = arith.constant 0 : i32
    return %c0_i32, %c0_i32_0, %c0_i32_1 : i32, i32, i32
  }
  func.func @transform_17(%arg0: i32) -> (i32, i32) {
    %c0_i32 = arith.constant 0 : i32
    %c0_i32_0 = arith.constant 0 : i32
    %c0_i32_1 = arith.constant 0 : i32
    return %c0_i32, %c0_i32_0 : i32, i32
  }
  func.func @transform_18(%arg0: i32) -> (i32, i32) {
    %c0_i32 = arith.constant 0 : i32
    %c0_i32_0 = arith.constant 0 : i32
    %c0_i32_1 = arith.constant 0 : i32
    return %c0_i32, %c0_i32_0 : i32, i32
  }
  func.func @transform_19(%arg0: i32) -> (i32, i32, i32, i32) {
    %c0_i32 = arith.constant 0 : i32
    %c0_i32_0 = arith.constant 0 : i32
    %c0_i32_1 = arith.constant 0 : i32
    %c0_i32_2 = arith.constant 0 : i32
    return %arg0, %c0_i32, %c0_i32_0, %c0_i32_1 : i32, i32, i32, i32
  }
  func.func @transform_20(%arg0: i32) -> (i32, i32, i32) {
    %c0_i32 = arith.constant 0 : i32
    %c0_i32_0 = arith.constant 0 : i32
    %c0_i32_1 = arith.constant 0 : i32
    return %arg0, %c0_i32, %c0_i32_0 : i32, i32, i32
  }
}

</mosaic_0001>

<llo_original>
// kernel: forward.1
$region0: #{forward.1}
  #allocation0 [shape = 'u32[]', space=smem, size = 0x4, offset = 0x4, fixed_abs, tag = 'smem constant byte address 0x4 - core index']
  #allocation1 [shape = 'u32[72,128]{1,0:T(1,128)}', space=vmem, size = 0x9000, scoped, tag = 'internal scratch']
  #allocation2 [shape = 'f32[2,6,16]{2,1,0:T(8,128)}', space=vmem, size = 0x2000, scoped, tag = 'scratch operand']
  #allocation3 [shape = 'f32[1,6,32]{2,1,0:T(8,128)}', space=vmem, size = 0x1000, scoped, tag = 'scratch operand']
  #allocation4 [shape = 'f32[2,6,16]{2,1,0:T(8,128)}', space=vmem, size = 0x2000, scoped, tag = 'scratch operand']
  %s0 = inlined_call_operand.vmem [shape: f32[2,4,6,8], index: 0, kind: input, shape index: {}]
  %s1 = inlined_call_operand.vmem [shape: bf16[4,8,16], index: 1, kind: input, shape index: {}]
  %s2 = inlined_call_operand.vmem [shape: f32[1,16], index: 2, kind: input, shape index: {}]
  %s3 = inlined_call_operand.vmem [shape: f32[1,16], index: 3, kind: input, shape index: {}]
  %s4 = inlined_call_operand.vmem [shape: bf16[4,16,32], index: 4, kind: input, shape index: {}]
  %s5 = inlined_call_operand.vmem [shape: f32[1,32], index: 5, kind: input, shape index: {}]
  %s6 = inlined_call_operand.vmem [shape: f32[1,32], index: 6, kind: input, shape index: {}]
  %s7 = inlined_call_operand.vmem [shape: bf16[32,192], index: 7, kind: input, shape index: {}]
  %s8 = inlined_call_operand.vmem [shape: f32[1,192], index: 8, kind: input, shape index: {}]
  %s9 = inlined_call_operand.vmem [shape: f32[128,192], index: 9, kind: input, shape index: {}]
  %s10 = inlined_call_operand.vmem [shape: f32[1,128], index: 10, kind: input, shape index: {}]
  %s11 = inlined_call_operand.vmem [shape: bf16[192,32], index: 11, kind: input, shape index: {}]
  %s12 = inlined_call_operand.vmem [shape: f32[1,32], index: 12, kind: input, shape index: {}]
  %s13 = inlined_call_operand.vmem [shape: bf16[4,32,16], index: 13, kind: input, shape index: {}]
  %s14 = inlined_call_operand.vmem [shape: f32[1,16], index: 14, kind: input, shape index: {}]
  %s15 = inlined_call_operand.vmem [shape: f32[1,16], index: 15, kind: input, shape index: {}]
  %s16 = inlined_call_operand.vmem [shape: bf16[4,16,8], index: 16, kind: input, shape index: {}]
  %s17 = inlined_call_operand.vmem [shape: f32[1,8], index: 17, kind: input, shape index: {}]
  %s18 = inlined_call_operand.vmem [shape: f32[1,8], index: 18, kind: input, shape index: {}]
  %s19 = inlined_call_operand.vmem [shape: f32[2,4,4,8], index: 19, kind: output, shape index: {0}]
  %s20 = inlined_call_operand.vmem [shape: f32[2,1,128], index: 20, kind: output, shape index: {1}]
  %21 = xla_tuple %s19, %s20
  %s22 = sld [smem:[#allocation0]]
  $region117: #{forward.1} parent=0
    _
  %s24 = ssub.s32 1, %s22
  %s25 = scalar_select 0, %s24, %s22
  loop: start=0, step=1, limit=4
  $region2: #{forward.1} parent=0 // loop_pre_header
    _
  $region3: #{forward.1} parent=0 // loop_header
    %s27 = sphi 0, %s31
    %p28 = scmp.ge.s32.totalorder %s27, 4
    %s37 = sphi 0, %s39
    %s40 = sphi 0, %s37
    %s41 = sphi 0, %s40
    %s57 = sphi 0, %s41
    %s61 = sphi 0, %s61
    %s63 = sphi 0, %s61
    %s64 = sphi 0, %s63
    %s78 = sphi 0, %s64
    %s82 = sphi 0, %s82
    %s84 = sphi 0, %s82
    %s85 = sphi 0, %s84
    %s99 = sphi 0, %s85
    %s103 = sphi 0, %s103
    %s105 = sphi 0, %s103
    %s106 = sphi 0, %s105
    %s120 = sphi 0, %s106
    %s124 = sphi 0, %s124
    %s126 = sphi 0, %s124
    %s127 = sphi 0, %s126
    %s141 = sphi 0, %s127
    %s145 = sphi 0, %s145
    %s147 = sphi 0, %s145
    %s148 = sphi 0, %s147
    %s162 = sphi 0, %s148
    %s166 = sphi 0, %s166
    %s168 = sphi 0, %s166
    %s169 = sphi 0, %s168
    %s183 = sphi 0, %s169
    %s187 = sphi 0, %s187
    %s189 = sphi 0, %s187
    %s190 = sphi 0, %s189
    %s204 = sphi 0, %s190
    %s208 = sphi 0, %s208
    %s210 = sphi 0, %s208
    %s211 = sphi 0, %s210
    %s225 = sphi 0, %s211
    %s229 = sphi 0, %s229
    %s231 = sphi 0, %s229
    %s232 = sphi 0, %s231
    %s246 = sphi 0, %s232
    %s250 = sphi 0, %s250
    %s252 = sphi 0, %s250
    %s253 = sphi 0, %s252
    %s267 = sphi 0, %s253
    %s271 = sphi 0, %s271
    %s273 = sphi 0, %s271
    %s274 = sphi 0, %s273
    %s288 = sphi 0, %s274
    %s292 = sphi 0, %s292
    %s294 = sphi 0, %s292
    %s295 = sphi 0, %s294
    %s309 = sphi 0, %s295
    %s313 = sphi 0, %s313
    %s315 = sphi 0, %s313
    %s316 = sphi 0, %s315
    %s330 = sphi 0, %s316
    %s334 = sphi 0, %s334
    %s336 = sphi 0, %s334
    %s337 = sphi 0, %s336
    %s351 = sphi 0, %s337
    %s355 = sphi 0, %s355
    %s357 = sphi 0, %s355
    %s358 = sphi 0, %s357
    %s372 = sphi 0, %s358
    %s376 = sphi 0, %s376
    %s378 = sphi 0, %s376
    %s379 = sphi 0, %s378
    %s393 = sphi 0, %s379
    %s397 = sphi 0, %s397
    %s399 = sphi 0, %s397
    %s400 = sphi 0, %s399
    %s414 = sphi 0, %s400
    %s418 = sphi 0, %s418
    %s420 = sphi 0, %s418
    %s421 = sphi 0, %s420
    %s435 = sphi 0, %s421
    %s441 = sphi 0, %s443
    %s444 = sphi 0, %s441
    %s445 = sphi 0, %s444
    %s461 = sphi 0, %s445
    %s467 = sphi 0, %s469
    %s470 = sphi 0, %s467
    %s471 = sphi 0, %s470
    %s487 = sphi 0, %s471
  $region4: #{forward.1} parent=0 // loop_header_branch
    %30 = sbr.rel (%p28) target = $region8
  $region5: #{forward.1} parent=0 // loop_body
    %s32 = ssub.s32 %s27, 1
    %s33 = ssub.s32 %s27, 2
    %s34 = sadd.s32 %s27, 1
    %s35 = ssub.s32 %s27, %s34
    %p36 = scmp.eq.s32.totalorder %s35, 0
    %s38 = sadd.s32 %s37, 1
    %s39 = scalar_select %p36, %s37, %s38
    %p42 = pneg %p36
    %p43 = scmp.eq.s32.totalorder %s27, 1
    %p44 = por %p42, %p43
    %p45 = scmp.ne.s32.totalorder %s37, %s40
    %p46 = scmp.eq.s32.totalorder %s27, 0
    %p47 = por %p45, %p46
    %p48 = scmp.ne.s32.totalorder %s37, %s40
    %p49 = scmp.eq.s32.totalorder %s32, 1
    %p50 = por %p48, %p49
    %p51 = scmp.ne.s32.totalorder %s40, %s41
    %p52 = scmp.eq.s32.totalorder %s32, 0
    %p53 = por %p51, %p52
    %p54 = scmp.ne.s32.totalorder %s40, %s41
    %p55 = scmp.eq.s32.totalorder %s33, 1
    %p56 = por %p54, %p55
    %p58 = scmp.ne.s32.totalorder %s41, %s57
    %p59 = scmp.eq.s32.totalorder %s33, 0
    %p60 = por %p58, %p59
    %s62 = sadd.s32 %s61, 1
    %p65 = scmp.eq.s32.totalorder %s27, 1
    %p66 = scmp.ne.s32.totalorder %s61, %s63
    %p67 = scmp.eq.s32.totalorder %s27, 0
    %p68 = por %p66, %p67
    %p69 = scmp.ne.s32.totalorder %s61, %s63
    %p70 = scmp.eq.s32.totalorder %s32, 1
    %p71 = por %p69, %p70
    %p72 = scmp.ne.s32.totalorder %s63, %s64
    %p73 = scmp.eq.s32.totalorder %s32, 0
    %p74 = por %p72, %p73
    %p75 = scmp.ne.s32.totalorder %s63, %s64
    %p76 = scmp.eq.s32.totalorder %s33, 1
    %p77 = por %p75, %p76
    %p79 = scmp.ne.s32.totalorder %s64, %s78
    %p80 = scmp.eq.s32.totalorder %s33, 0
    %p81 = por %p79, %p80
    %s83 = sadd.s32 %s82, 1
    %p86 = scmp.eq.s32.totalorder %s27, 1
    %p87 = scmp.ne.s32.totalorder %s82, %s84
    %p88 = scmp.eq.s32.totalorder %s27, 0
    %p89 = por %p87, %p88
    %p90 = scmp.ne.s32.totalorder %s82, %s84
    %p91 = scmp.eq.s32.totalorder %s32, 1
    %p92 = por %p90, %p91
    %p93 = scmp.ne.s32.totalorder %s84, %s85
    %p94 = scmp.eq.s32.totalorder %s32, 0
    %p95 = por %p93, %p94
    %p96 = scmp.ne.s32.totalorder %s84, %s85
    %p97 = scmp.eq.s32.totalorder %s33, 1
    %p98 = por %p96, %p97
    %p100 = scmp.ne.s32.totalorder %s85, %s99
    %p101 = scmp.eq.s32.totalorder %s33, 0
    %p102 = por %p100, %p101
    %s104 = sadd.s32 %s103, 1
    %p107 = scmp.eq.s32.totalorder %s27, 1
    %p108 = scmp.ne.s32.totalorder %s103, %s105
    %p109 = scmp.eq.s32.totalorder %s27, 0
    %p110 = por %p108, %p109
    %p111 = scmp.ne.s32.totalorder %s103, %s105
    %p112 = scmp.eq.s32.totalorder %s32, 1
    %p113 = por %p111, %p112
    %p114 = scmp.ne.s32.totalorder %s105, %s106
    %p115 = scmp.eq.s32.totalorder %s32, 0
    %p116 = por %p114, %p115
    %p117 = scmp.ne.s32.totalorder %s105, %s106
    %p118 = scmp.eq.s32.totalorder %s33, 1
    %p119 = por %p117, %p118
    %p121 = scmp.ne.s32.totalorder %s106, %s120
    %p122 = scmp.eq.s32.totalorder %s33, 0
    %p123 = por %p121, %p122
    %s125 = sadd.s32 %s124, 1
    %p128 = scmp.eq.s32.totalorder %s27, 1
    %p129 = scmp.ne.s32.totalorder %s124, %s126
    %p130 = scmp.eq.s32.totalorder %s27, 0
    %p131 = por %p129, %p130
    %p132 = scmp.ne.s32.totalorder %s124, %s126
    %p133 = scmp.eq.s32.totalorder %s32, 1
    %p134 = por %p132, %p133
    %p135 = scmp.ne.s32.totalorder %s126, %s127
    %p136 = scmp.eq.s32.totalorder %s32, 0
    %p137 = por %p135, %p136
    %p138 = scmp.ne.s32.totalorder %s126, %s127
    %p139 = scmp.eq.s32.totalorder %s33, 1
    %p140 = por %p138, %p139
    %p142 = scmp.ne.s32.totalorder %s127, %s141
    %p143 = scmp.eq.s32.totalorder %s33, 0
    %p144 = por %p142, %p143
    %s146 = sadd.s32 %s145, 1
    %p149 = scmp.eq.s32.totalorder %s27, 1
    %p150 = scmp.ne.s32.totalorder %s145, %s147
    %p151 = scmp.eq.s32.totalorder %s27, 0
    %p152 = por %p150, %p151
    %p153 = scmp.ne.s32.totalorder %s145, %s147
    %p154 = scmp.eq.s32.totalorder %s32, 1
    %p155 = por %p153, %p154
    %p156 = scmp.ne.s32.totalorder %s147, %s148
    %p157 = scmp.eq.s32.totalorder %s32, 0
    %p158 = por %p156, %p157
    %p159 = scmp.ne.s32.totalorder %s147, %s148
    %p160 = scmp.eq.s32.totalorder %s33, 1
    %p161 = por %p159, %p160
    %p163 = scmp.ne.s32.totalorder %s148, %s162
    %p164 = scmp.eq.s32.totalorder %s33, 0
    %p165 = por %p163, %p164
    %s167 = sadd.s32 %s166, 1
    %p170 = scmp.eq.s32.totalorder %s27, 1
    %p171 = scmp.ne.s32.totalorder %s166, %s168
    %p172 = scmp.eq.s32.totalorder %s27, 0
    %p173 = por %p171, %p172
    %p174 = scmp.ne.s32.totalorder %s166, %s168
    %p175 = scmp.eq.s32.totalorder %s32, 1
    %p176 = por %p174, %p175
    %p177 = scmp.ne.s32.totalorder %s168, %s169
    %p178 = scmp.eq.s32.totalorder %s32, 0
    %p179 = por %p177, %p178
    %p180 = scmp.ne.s32.totalorder %s168, %s169
    %p181 = scmp.eq.s32.totalorder %s33, 1
    %p182 = por %p180, %p181
    %p184 = scmp.ne.s32.totalorder %s169, %s183
    %p185 = scmp.eq.s32.totalorder %s33, 0
    %p186 = por %p184, %p185
    %s188 = sadd.s32 %s187, 1
    %p191 = scmp.eq.s32.totalorder %s27, 1
    %p192 = scmp.ne.s32.totalorder %s187, %s189
    %p193 = scmp.eq.s32.totalorder %s27, 0
    %p194 = por %p192, %p193
    %p195 = scmp.ne.s32.totalorder %s187, %s189
    %p196 = scmp.eq.s32.totalorder %s32, 1
    %p197 = por %p195, %p196
    %p198 = scmp.ne.s32.totalorder %s189, %s190
    %p199 = scmp.eq.s32.totalorder %s32, 0
    %p200 = por %p198, %p199
    %p201 = scmp.ne.s32.totalorder %s189, %s190
    %p202 = scmp.eq.s32.totalorder %s33, 1
    %p203 = por %p201, %p202
    %p205 = scmp.ne.s32.totalorder %s190, %s204
    %p206 = scmp.eq.s32.totalorder %s33, 0
    %p207 = por %p205, %p206
    %s209 = sadd.s32 %s208, 1
    %p212 = scmp.eq.s32.totalorder %s27, 1
    %p213 = scmp.ne.s32.totalorder %s208, %s210
    %p214 = scmp.eq.s32.totalorder %s27, 0
    %p215 = por %p213, %p214
    %p216 = scmp.ne.s32.totalorder %s208, %s210
    %p217 = scmp.eq.s32.totalorder %s32, 1
    %p218 = por %p216, %p217
    %p219 = scmp.ne.s32.totalorder %s210, %s211
    %p220 = scmp.eq.s32.totalorder %s32, 0
    %p221 = por %p219, %p220
    %p222 = scmp.ne.s32.totalorder %s210, %s211
    %p223 = scmp.eq.s32.totalorder %s33, 1
    %p224 = por %p222, %p223
    %p226 = scmp.ne.s32.totalorder %s211, %s225
    %p227 = scmp.eq.s32.totalorder %s33, 0
    %p228 = por %p226, %p227
    %s230 = sadd.s32 %s229, 1
    %p233 = scmp.eq.s32.totalorder %s27, 1
    %p234 = scmp.ne.s32.totalorder %s229, %s231
    %p235 = scmp.eq.s32.totalorder %s27, 0
    %p236 = por %p234, %p235
    %p237 = scmp.ne.s32.totalorder %s229, %s231
    %p238 = scmp.eq.s32.totalorder %s32, 1
    %p239 = por %p237, %p238
    %p240 = scmp.ne.s32.totalorder %s231, %s232
    %p241 = scmp.eq.s32.totalorder %s32, 0
    %p242 = por %p240, %p241
    %p243 = scmp.ne.s32.totalorder %s231, %s232
    %p244 = scmp.eq.s32.totalorder %s33, 1
    %p245 = por %p243, %p244
    %p247 = scmp.ne.s32.totalorder %s232, %s246
    %p248 = scmp.eq.s32.totalorder %s33, 0
    %p249 = por %p247, %p248
    %s251 = sadd.s32 %s250, 1
    %p254 = scmp.eq.s32.totalorder %s27, 1
    %p255 = scmp.ne.s32.totalorder %s250, %s252
    %p256 = scmp.eq.s32.totalorder %s27, 0
    %p257 = por %p255, %p256
    %p258 = scmp.ne.s32.totalorder %s250, %s252
    %p259 = scmp.eq.s32.totalorder %s32, 1
    %p260 = por %p258, %p259
    %p261 = scmp.ne.s32.totalorder %s252, %s253
    %p262 = scmp.eq.s32.totalorder %s32, 0
    %p263 = por %p261, %p262
    %p264 = scmp.ne.s32.totalorder %s252, %s253
    %p265 = scmp.eq.s32.totalorder %s33, 1
    %p266 = por %p264, %p265
    %p268 = scmp.ne.s32.totalorder %s253, %s267
    %p269 = scmp.eq.s32.totalorder %s33, 0
    %p270 = por %p268, %p269
    %s272 = sadd.s32 %s271, 1
    %p275 = scmp.eq.s32.totalorder %s27, 1
    %p276 = scmp.ne.s32.totalorder %s271, %s273
    %p277 = scmp.eq.s32.totalorder %s27, 0
    %p278 = por %p276, %p277
    %p279 = scmp.ne.s32.totalorder %s271, %s273
    %p280 = scmp.eq.s32.totalorder %s32, 1
    %p281 = por %p279, %p280
    %p282 = scmp.ne.s32.totalorder %s273, %s274
    %p283 = scmp.eq.s32.totalorder %s32, 0
    %p284 = por %p282, %p283
    %p285 = scmp.ne.s32.totalorder %s273, %s274
    %p286 = scmp.eq.s32.totalorder %s33, 1
    %p287 = por %p285, %p286
    %p289 = scmp.ne.s32.totalorder %s274, %s288
    %p290 = scmp.eq.s32.totalorder %s33, 0
    %p291 = por %p289, %p290
    %s293 = sadd.s32 %s292, 1
    %p296 = scmp.eq.s32.totalorder %s27, 1
    %p297 = scmp.ne.s32.totalorder %s292, %s294
    %p298 = scmp.eq.s32.totalorder %s27, 0
    %p299 = por %p297, %p298
    %p300 = scmp.ne.s32.totalorder %s292, %s294
    %p301 = scmp.eq.s32.totalorder %s32, 1
    %p302 = por %p300, %p301
    %p303 = scmp.ne.s32.totalorder %s294, %s295
    %p304 = scmp.eq.s32.totalorder %s32, 0
    %p305 = por %p303, %p304
    %p306 = scmp.ne.s32.totalorder %s294, %s295
    %p307 = scmp.eq.s32.totalorder %s33, 1
    %p308 = por %p306, %p307
    %p310 = scmp.ne.s32.totalorder %s295, %s309
    %p311 = scmp.eq.s32.totalorder %s33, 0
    %p312 = por %p310, %p311
    %s314 = sadd.s32 %s313, 1
    %p317 = scmp.eq.s32.totalorder %s27, 1
    %p318 = scmp.ne.s32.totalorder %s313, %s315
    %p319 = scmp.eq.s32.totalorder %s27, 0
    %p320 = por %p318, %p319
    %p321 = scmp.ne.s32.totalorder %s313, %s315
    %p322 = scmp.eq.s32.totalorder %s32, 1
    %p323 = por %p321, %p322
    %p324 = scmp.ne.s32.totalorder %s315, %s316
    %p325 = scmp.eq.s32.totalorder %s32, 0
    %p326 = por %p324, %p325
    %p327 = scmp.ne.s32.totalorder %s315, %s316
    %p328 = scmp.eq.s32.totalorder %s33, 1
    %p329 = por %p327, %p328
    %p331 = scmp.ne.s32.totalorder %s316, %s330
    %p332 = scmp.eq.s32.totalorder %s33, 0
    %p333 = por %p331, %p332
    %s335 = sadd.s32 %s334, 1
    %p338 = scmp.eq.s32.totalorder %s27, 1
    %p339 = scmp.ne.s32.totalorder %s334, %s336
    %p340 = scmp.eq.s32.totalorder %s27, 0
    %p341 = por %p339, %p340
    %p342 = scmp.ne.s32.totalorder %s334, %s336
    %p343 = scmp.eq.s32.totalorder %s32, 1
    %p344 = por %p342, %p343
    %p345 = scmp.ne.s32.totalorder %s336, %s337
    %p346 = scmp.eq.s32.totalorder %s32, 0
    %p347 = por %p345, %p346
    %p348 = scmp.ne.s32.totalorder %s336, %s337
    %p349 = scmp.eq.s32.totalorder %s33, 1
    %p350 = por %p348, %p349
    %p352 = scmp.ne.s32.totalorder %s337, %s351
    %p353 = scmp.eq.s32.totalorder %s33, 0
    %p354 = por %p352, %p353
    %s356 = sadd.s32 %s355, 1
    %p359 = scmp.eq.s32.totalorder %s27, 1
    %p360 = scmp.ne.s32.totalorder %s355, %s357
    %p361 = scmp.eq.s32.totalorder %s27, 0
    %p362 = por %p360, %p361
    %p363 = scmp.ne.s32.totalorder %s355, %s357
    %p364 = scmp.eq.s32.totalorder %s32, 1
    %p365 = por %p363, %p364
    %p366 = scmp.ne.s32.totalorder %s357, %s358
    %p367 = scmp.eq.s32.totalorder %s32, 0
    %p368 = por %p366, %p367
    %p369 = scmp.ne.s32.totalorder %s357, %s358
    %p370 = scmp.eq.s32.totalorder %s33, 1
    %p371 = por %p369, %p370
    %p373 = scmp.ne.s32.totalorder %s358, %s372
    %p374 = scmp.eq.s32.totalorder %s33, 0
    %p375 = por %p373, %p374
    %s377 = sadd.s32 %s376, 1
    %p380 = scmp.eq.s32.totalorder %s27, 1
    %p381 = scmp.ne.s32.totalorder %s376, %s378
    %p382 = scmp.eq.s32.totalorder %s27, 0
    %p383 = por %p381, %p382
    %p384 = scmp.ne.s32.totalorder %s376, %s378
    %p385 = scmp.eq.s32.totalorder %s32, 1
    %p386 = por %p384, %p385
    %p387 = scmp.ne.s32.totalorder %s378, %s379
    %p388 = scmp.eq.s32.totalorder %s32, 0
    %p389 = por %p387, %p388
    %p390 = scmp.ne.s32.totalorder %s378, %s379
    %p391 = scmp.eq.s32.totalorder %s33, 1
    %p392 = por %p390, %p391
    %p394 = scmp.ne.s32.totalorder %s379, %s393
    %p395 = scmp.eq.s32.totalorder %s33, 0
    %p396 = por %p394, %p395
    %s398 = sadd.s32 %s397, 1
    %p401 = scmp.eq.s32.totalorder %s27, 1
    %p402 = scmp.ne.s32.totalorder %s397, %s399
    %p403 = scmp.eq.s32.totalorder %s27, 0
    %p404 = por %p402, %p403
    %p405 = scmp.ne.s32.totalorder %s397, %s399
    %p406 = scmp.eq.s32.totalorder %s32, 1
    %p407 = por %p405, %p406
    %p408 = scmp.ne.s32.totalorder %s399, %s400
    %p409 = scmp.eq.s32.totalorder %s32, 0
    %p410 = por %p408, %p409
    %p411 = scmp.ne.s32.totalorder %s399, %s400
    %p412 = scmp.eq.s32.totalorder %s33, 1
    %p413 = por %p411, %p412
    %p415 = scmp.ne.s32.totalorder %s400, %s414
    %p416 = scmp.eq.s32.totalorder %s33, 0
    %p417 = por %p415, %p416
    %s419 = sadd.s32 %s418, 1
    %p422 = scmp.eq.s32.totalorder %s27, 1
    %p423 = scmp.ne.s32.totalorder %s418, %s420
    %p424 = scmp.eq.s32.totalorder %s27, 0
    %p425 = por %p423, %p424
    %p426 = scmp.ne.s32.totalorder %s418, %s420
    %p427 = scmp.eq.s32.totalorder %s32, 1
    %p428 = por %p426, %p427
    %p429 = scmp.ne.s32.totalorder %s420, %s421
    %p430 = scmp.eq.s32.totalorder %s32, 0
    %p431 = por %p429, %p430
    %p432 = scmp.ne.s32.totalorder %s420, %s421
    %p433 = scmp.eq.s32.totalorder %s33, 1
    %p434 = por %p432, %p433
    %p436 = scmp.ne.s32.totalorder %s421, %s435
    %p437 = scmp.eq.s32.totalorder %s33, 0
    %p438 = por %p436, %p437
    %s439 = ssub.s32 %s27, %s34
    %p440 = scmp.eq.s32.totalorder %s439, 0
    %s442 = sadd.s32 %s441, 1
    %s443 = scalar_select %p440, %s441, %s442
    %p446 = pneg %p440
    %p447 = scmp.eq.s32.totalorder %s27, 1
    %p448 = por %p446, %p447
    %p449 = scmp.ne.s32.totalorder %s441, %s444
    %p450 = scmp.eq.s32.totalorder %s27, 0
    %p451 = por %p449, %p450
    %p452 = scmp.ne.s32.totalorder %s441, %s444
    %p453 = scmp.eq.s32.totalorder %s32, 1
    %p454 = por %p452, %p453
    %p455 = scmp.ne.s32.totalorder %s444, %s445
    %p456 = scmp.eq.s32.totalorder %s32, 0
    %p457 = por %p455, %p456
    %p458 = scmp.ne.s32.totalorder %s444, %s445
    %p459 = scmp.eq.s32.totalorder %s33, 1
    %p460 = por %p458, %p459
    %p462 = scmp.ne.s32.totalorder %s445, %s461
    %p463 = scmp.eq.s32.totalorder %s33, 0
    %p464 = por %p462, %p463
    %s465 = ssub.s32 %s27, %s34
    %p466 = scmp.eq.s32.totalorder %s465, 0
    %s468 = sadd.s32 %s467, 1
    %s469 = scalar_select %p466, %s467, %s468
    %p472 = pneg %p466
    %p473 = scmp.eq.s32.totalorder %s27, 1
    %p474 = por %p472, %p473
    %p475 = scmp.ne.s32.totalorder %s467, %s470
    %p476 = scmp.eq.s32.totalorder %s27, 0
    %p477 = por %p475, %p476
    %p478 = scmp.ne.s32.totalorder %s467, %s470
    %p479 = scmp.eq.s32.totalorder %s32, 1
    %p480 = por %p478, %p479
    %p481 = scmp.ne.s32.totalorder %s470, %s471
    %p482 = scmp.eq.s32.totalorder %s32, 0
    %p483 = por %p481, %p482
    %p484 = scmp.ne.s32.totalorder %s470, %s471
    %p485 = scmp.eq.s32.totalorder %s33, 1
    %p486 = por %p484, %p485
    %p488 = scmp.ne.s32.totalorder %s471, %s487
    %p489 = scmp.eq.s32.totalorder %s33, 0
    %p490 = por %p488, %p489
    %p491 = scmp.le.s32.totalorder 1, %s27
    %p492 = scmp.lt.s32.totalorder %s27, 3
    %p493 = pnand %p491, %p492
    %p494 = pneg %p493
    // Predicated region
    $region9: #{forward.1} parent=5 // pred_check
      _
    $region10: #{forward.1} parent=5 // pred_check_branch
      %496 = sbr.rel (%p493) target = $region12
    $region11: #{forward.1} parent=5 // pred_region
      %s497 = ssub.s32 %s27, 1
      // Predicated region
      $region13: #{forward.1} parent=11 // pred_check
        %p498 = pneg %p74
      $region14: #{forward.1} parent=11 // pred_check_branch
        %500 = sbr.rel (%p498) target = $region16
      $region15: #{forward.1} parent=11 // pred_region
        _
      $region16: #{forward.1} parent=11 // pred_fallthru
        _
      // Predicated region
      $region17: #{forward.1} parent=11 // pred_check
        %p501 = pneg %p95
      $region18: #{forward.1} parent=11 // pred_check_branch
        %503 = sbr.rel (%p501) target = $region20
      $region19: #{forward.1} parent=11 // pred_region
        _
      $region20: #{forward.1} parent=11 // pred_fallthru
        _
      // Predicated region
      $region21: #{forward.1} parent=11 // pred_check
        %p504 = pneg %p116
      $region22: #{forward.1} parent=11 // pred_check_branch
        %506 = sbr.rel (%p504) target = $region24
      $region23: #{forward.1} parent=11 // pred_region
        _
      $region24: #{forward.1} parent=11 // pred_fallthru
        _
      // Predicated region
      $region25: #{forward.1} parent=11 // pred_check
        %p507 = pneg %p137
      $region26: #{forward.1} parent=11 // pred_check_branch
        %509 = sbr.rel (%p507) target = $region28
      $region27: #{forward.1} parent=11 // pred_region
        _
      $region28: #{forward.1} parent=11 // pred_fallthru
        _
      // Predicated region
      $region29: #{forward.1} parent=11 // pred_check
        %p510 = pneg %p158
      $region30: #{forward.1} parent=11 // pred_check_branch
        %512 = sbr.rel (%p510) target = $region32
      $region31: #{forward.1} parent=11 // pred_region
        _
      $region32: #{forward.1} parent=11 // pred_fallthru
        _
      // Predicated region
      $region33: #{forward.1} parent=11 // pred_check
        %p513 = pneg %p179
      $region34: #{forward.1} parent=11 // pred_check_branch
        %515 = sbr.rel (%p513) target = $region36
      $region35: #{forward.1} parent=11 // pred_region
        _
      $region36: #{forward.1} parent=11 // pred_fallthru
        _
      // Predicated region
      $region37: #{forward.1} parent=11 // pred_check
        %p516 = pneg %p200
      $region38: #{forward.1} parent=11 // pred_check_branch
        %518 = sbr.rel (%p516) target = $region40
      $region39: #{forward.1} parent=11 // pred_region
        _
      $region40: #{forward.1} parent=11 // pred_fallthru
        _
      // Predicated region
      $region41: #{forward.1} parent=11 // pred_check
        %p519 = pneg %p221
      $region42: #{forward.1} parent=11 // pred_check_branch
        %521 = sbr.rel (%p519) target = $region44
      $region43: #{forward.1} parent=11 // pred_region
        _
      $region44: #{forward.1} parent=11 // pred_fallthru
        _
      // Predicated region
      $region45: #{forward.1} parent=11 // pred_check
        %p522 = pneg %p242
      $region46: #{forward.1} parent=11 // pred_check_branch
        %524 = sbr.rel (%p522) target = $region48
      $region47: #{forward.1} parent=11 // pred_region
        _
      $region48: #{forward.1} parent=11 // pred_fallthru
        _
      // Predicated region
      $region49: #{forward.1} parent=11 // pred_check
        %p525 = pneg %p263
      $region50: #{forward.1} parent=11 // pred_check_branch
        %527 = sbr.rel (%p525) target = $region52
      $region51: #{forward.1} parent=11 // pred_region
        _
      $region52: #{forward.1} parent=11 // pred_fallthru
        _
      // Predicated region
      $region53: #{forward.1} parent=11 // pred_check
        %p528 = pneg %p284
      $region54: #{forward.1} parent=11 // pred_check_branch
        %530 = sbr.rel (%p528) target = $region56
      $region55: #{forward.1} parent=11 // pred_region
        _
      $region56: #{forward.1} parent=11 // pred_fallthru
        _
      // Predicated region
      $region57: #{forward.1} parent=11 // pred_check
        %p531 = pneg %p305
      $region58: #{forward.1} parent=11 // pred_check_branch
        %533 = sbr.rel (%p531) target = $region60
      $region59: #{forward.1} parent=11 // pred_region
        _
      $region60: #{forward.1} parent=11 // pred_fallthru
        _
      // Predicated region
      $region61: #{forward.1} parent=11 // pred_check
        %p534 = pneg %p326
      $region62: #{forward.1} parent=11 // pred_check_branch
        %536 = sbr.rel (%p534) target = $region64
      $region63: #{forward.1} parent=11 // pred_region
        _
      $region64: #{forward.1} parent=11 // pred_fallthru
        _
      // Predicated region
      $region65: #{forward.1} parent=11 // pred_check
        %p537 = pneg %p347
      $region66: #{forward.1} parent=11 // pred_check_branch
        %539 = sbr.rel (%p537) target = $region68
      $region67: #{forward.1} parent=11 // pred_region
        _
      $region68: #{forward.1} parent=11 // pred_fallthru
        _
      // Predicated region
      $region69: #{forward.1} parent=11 // pred_check
        %p540 = pneg %p368
      $region70: #{forward.1} parent=11 // pred_check_branch
        %542 = sbr.rel (%p540) target = $region72
      $region71: #{forward.1} parent=11 // pred_region
        _
      $region72: #{forward.1} parent=11 // pred_fallthru
        _
      // Predicated region
      $region73: #{forward.1} parent=11 // pred_check
        %p543 = pneg %p389
      $region74: #{forward.1} parent=11 // pred_check_branch
        %545 = sbr.rel (%p543) target = $region76
      $region75: #{forward.1} parent=11 // pred_region
        _
      $region76: #{forward.1} parent=11 // pred_fallthru
        _
      // Predicated region
      $region77: #{forward.1} parent=11 // pred_check
        %p546 = pneg %p410
      $region78: #{forward.1} parent=11 // pred_check_branch
        %548 = sbr.rel (%p546) target = $region80
      $region79: #{forward.1} parent=11 // pred_region
        _
      $region80: #{forward.1} parent=11 // pred_fallthru
        _
      // Predicated region
      $region81: #{forward.1} parent=11 // pred_check
        %p549 = pneg %p431
      $region82: #{forward.1} parent=11 // pred_check_branch
        %551 = sbr.rel (%p549) target = $region84
      $region83: #{forward.1} parent=11 // pred_region
        _
      $region84: #{forward.1} parent=11 // pred_fallthru
        _
    $region12: #{forward.1} parent=5 // pred_fallthru
      _
    %p552 = scmp.lt.s32.totalorder %s27, 2
    // Predicated region
    $region85: #{forward.1} parent=5 // pred_check
      %p553 = pneg %p552
    $region86: #{forward.1} parent=5 // pred_check_branch
      %555 = sbr.rel (%p553) target = $region88
    $region87: #{forward.1} parent=5 // pred_region
      // Predicated region
      $region89: #{forward.1} parent=87 // pred_check
        %p556 = pneg %p47
      $region90: #{forward.1} parent=87 // pred_check_branch
        %558 = sbr.rel (%p556) target = $region92
      $region91: #{forward.1} parent=87 // pred_region
        %p559 = scmp.lt.s32.totalorder %s27, 1
        %s560 = scalar_select %p559, %s27, 1
        %s561 = smul.addr %s560, 4
        %s562 = smul.addr %s561, 8
        %s563 = scalar_lea.vmem %s0, %s562
      $region92: #{forward.1} parent=87 // pred_fallthru
        _
    $region88: #{forward.1} parent=5 // pred_fallthru
      _
    %p564 = scmp.le.s32.totalorder 1, %s27
    %p565 = scmp.lt.s32.totalorder %s27, 3
    %p566 = pnand %p564, %p565
    %p567 = pneg %p566
    // Predicated region
    $region93: #{forward.1} parent=5 // pred_check
      _
    $region94: #{forward.1} parent=5 // pred_check_branch
      %569 = sbr.rel (%p566) target = $region96
    $region95: #{forward.1} parent=5 // pred_region
      %s570 = ssub.s32 %s27, 1
      %p571 = scmp.lt.s32.totalorder %s32, 1
      %s572 = scalar_select %p571, %s32, 1
      %s573 = smul.addr %s572, 4
      %s574 = smul.addr %s573, 8
      %s575 = scalar_lea.vmem %s0, %s574
      %p576 = pneg %p53
      %p577 = pneg %p50
      %p578 = pneg %p74
      %p579 = pneg %p71
      %p580 = pneg %p95
      %p581 = pneg %p92
      %p582 = pneg %p116
      %p583 = pneg %p113
      %p584 = pneg %p137
      %p585 = pneg %p134
      %p586 = pneg %p158
      %p587 = pneg %p155
      %p588 = pneg %p179
      %p589 = pneg %p176
      %p590 = pneg %p200
      %p591 = pneg %p197
      %p592 = pneg %p221
      %p593 = pneg %p218
      %p594 = pneg %p242
      %p595 = pneg %p239
      %p596 = pneg %p263
      %p597 = pneg %p260
      %p598 = pneg %p284
      %p599 = pneg %p281
      %p600 = pneg %p305
      %p601 = pneg %p302
      %p602 = pneg %p326
      %p603 = pneg %p323
      %p604 = pneg %p347
      %p605 = pneg %p344
      %p606 = pneg %p368
      %p607 = pneg %p365
      %p608 = pneg %p389
      %p609 = pneg %p386
      %p610 = pneg %p410
      %p611 = pneg %p407
      %p612 = pneg %p431
      %p613 = pneg %p428
      %p614 = pneg %p457
      %p615 = pneg %p454
      %p616 = scmp.lt.s32.totalorder %s32, 1
      %s617 = scalar_select %p616, %s32, 1
      %s618 = smul.addr %s617, 4
      %s619 = smul.addr %s618, 4
      %s620 = scalar_lea.vmem %s19, %s619
      %p621 = pneg %p483
      %p622 = pneg %p480
      %p623 = scmp.lt.s32.totalorder %s32, 1
      %s624 = scalar_select %p623, %s32, 1
      %s625 = scalar_lea.vmem %s20, %s624
      %p626 = scmp.lt.s32.totalorder %s32, 1
      %s627 = scalar_select %p626, %s32, 1
      %s628 = smul.addr %s627, 4
      %s629 = smul.addr %s628, 8
      %s630 = scalar_lea.vmem %s0, %s629
      %p631 = scmp.lt.s32.totalorder %s32, 1
      %s632 = scalar_select %p631, %s32, 1
      %s633 = smul.addr %s632, 4
      %s634 = smul.addr %s633, 4
      %s635 = scalar_lea.vmem %s19, %s634
      %p636 = scmp.lt.s32.totalorder %s32, 1
      %s637 = scalar_select %p636, %s32, 1
      %s638 = scalar_lea.vmem %s20, %s637
      %vm640 = vcmask 128000
      %641 = vst.msk [vmem:[#allocation2] sm:$0x3f] %vm640, 0.0
      %642 = vst.msk [vmem:[#allocation2 + $0x8] sm:$0x3f] %vm640, 0.0
      %vm643 = vcmask 259072
      %644 = vst.msk [vmem:[#allocation3] sm:$0x3f] %vm643, 0.0
      %645 = vst.msk [vmem:[#allocation4] sm:$0x3f] %vm640, 0.0
      %646 = vst.msk [vmem:[#allocation4 + $0x8] sm:$0x3f] %vm640, 0.0
      %vm647 = vcmask 60416
      %648 = vst.msk [vmem:[%s635] sm:$0xf] %vm647, 0.0
      %649 = vst.msk [vmem:[%s635 + $0x4] sm:$0xf] %vm647, 0.0
      %650 = vst.msk [vmem:[%s635 + $0x8] sm:$0xf] %vm647, 0.0
      %651 = vst.msk [vmem:[%s635 + $0xc] sm:$0xf] %vm647, 0.0
      %s652 = scalar_lea.vmem %s630, 24
      %v653 = vld [vmem:[%s652] sm:$0xf]
      %v654 = vpack.c.bf16 %v653, %v653
      %v655 = vld [vmem:[%s1] sm:$0xf]
      %v656 = vld [vmem:[%s630 + $0x1] sm:$0xf]
      %v657 = vpack.c.bf16 %v656, %v656
      %s658 = scalar_lea.vmem %s1, 4
      %v659 = vld [vmem:[%s658] sm:$0xf]
      %vm660 = vcmask 64512
      %v662 = vsel %vm660, %v657, 0
      %vm664 = vcmask 1043456
      %v666 = vsel %vm664, %v659, 0
      %668 = vmatpush.bf16.msra.mxu0 0
      %669 = vmatpush.bf16.msra.mxu0 0
      %670 = vmatpush.bf16.msra.mxu0 0
      %671 = vmatpush.bf16.msra.mxu0 0
      %672 = vmatpush.bf16.msra.mxu0 0
      %673 = vmatpush.bf16.msra.mxu0 0
      %674 = vmatpush.bf16.msra.mxu0 0
      %675 = vmatpush.bf16.msra.mxu0 %v666
      %676 = vmatmul.bf16.gmra.mxu0 %v662
      %v677 = vpop.f32.mrf.mxu0
      %v678 = vadd.f32 0.0, %v677
      %v679 = vpop.f32.mrf.mxu0
      %680 = vdwg.mxu0
      %v682 = vsel %vm660, %v654, 0
      %v685 = vsel %vm664, %v655, 0
      %687 = vmatpush.bf16.msra.mxu0 0
      %688 = vmatpush.bf16.msra.mxu0 0
      %689 = vmatpush.bf16.msra.mxu0 0
      %690 = vmatpush.bf16.msra.mxu0 0
      %691 = vmatpush.bf16.msra.mxu0 0
      %692 = vmatpush.bf16.msra.mxu0 0
      %693 = vmatpush.bf16.msra.mxu0 0
      %694 = vmatpush.bf16.msra.mxu0 %v685
      %695 = vmatmul.bf16.gmra.mxu0 %v682
      %v696 = vpop.f32.mrf.mxu0
      %v697 = vadd.f32 %v678, %v696
      %v698 = vpop.f32.mrf.mxu0
      %699 = vdwg.mxu0
      %s700 = scalar_lea.vmem %s630, 8
      %v701 = vld [vmem:[%s700 + $0x1] sm:$0xf]
      %v702 = vpack.c.bf16 %v701, %v701
      %s703 = scalar_lea.vmem %s1, 8
      %v704 = vld [vmem:[%s703] sm:$0xf]
      %v706 = vsel %vm660, %v702, 0
      %v709 = vsel %vm664, %v704, 0
      %711 = vmatpush.bf16.msra.mxu0 0
      %712 = vmatpush.bf16.msra.mxu0 0
      %713 = vmatpush.bf16.msra.mxu0 0
      %714 = vmatpush.bf16.msra.mxu0 0
      %715 = vmatpush.bf16.msra.mxu0 0
      %716 = vmatpush.bf16.msra.mxu0 0
      %717 = vmatpush.bf16.msra.mxu0 0
      %718 = vmatpush.bf16.msra.mxu0 %v709
      %719 = vmatmul.bf16.gmra.mxu0 %v706
      %v720 = vpop.f32.mrf.mxu0
      %v721 = vadd.f32 0.0, %v720
      %v722 = vpop.f32.mrf.mxu0
      %723 = vdwg.mxu0
      %v724 = vadd.f32 %v697, %v721
      %s725 = scalar_lea.vmem %s630, 16
      %v726 = vld [vmem:[%s725 + $0x1] sm:$0xf]
      %v727 = vpack.c.bf16 %v726, %v726
      %s728 = scalar_lea.vmem %s1, 12
      %v729 = vld [vmem:[%s728] sm:$0xf]
      %v731 = vsel %vm660, %v727, 0
      %v734 = vsel %vm664, %v729, 0
      %736 = vmatpush.bf16.msra.mxu0 0
      %737 = vmatpush.bf16.msra.mxu0 0
      %738 = vmatpush.bf16.msra.mxu0 0
      %739 = vmatpush.bf16.msra.mxu0 0
      %740 = vmatpush.bf16.msra.mxu0 0
      %741 = vmatpush.bf16.msra.mxu0 0
      %742 = vmatpush.bf16.msra.mxu0 0
      %743 = vmatpush.bf16.msra.mxu0 %v734
      %744 = vmatmul.bf16.gmra.mxu0 %v731
      %v745 = vpop.f32.mrf.mxu0
      %v746 = vadd.f32 0.0, %v745
      %v747 = vpop.f32.mrf.mxu0
      %748 = vdwg.mxu0
      %v749 = vadd.f32 %v724, %v746
      %v750 = vld [vmem:[%s2] sm:$0x1]
      %v752 = vperm.slane %v750, 0
      %v754 = vmul.f32 %v749, %v752
      %v755 = vld [vmem:[%s3] sm:$0x1]
      %v757 = vperm.slane %v755, 0
      %v759 = vadd.f32 %v754, %v757
      %vm760 = vcmask 125952
      %761 = vst.msk [vmem:[#allocation2 + $0x1] sm:$0xf] %vm760, %v759
      %v762 = vld [vmem:[%s700 + $0x1] sm:$0xf]
      %v763 = vpack.c.bf16 %v762, %v762
      %v764 = vld [vmem:[%s1] sm:$0xf]
      %v765 = vld [vmem:[%s725 + $0x1] sm:$0xf]
      %v766 = vpack.c.bf16 %v765, %v765
      %v767 = vld [vmem:[%s658] sm:$0xf]
      %v769 = vsel %vm660, %v766, 0
      %v772 = vsel %vm664, %v767, 0
      %774 = vmatpush.bf16.msra.mxu0 0
      %775 = vmatpush.bf16.msra.mxu0 0
      %776 = vmatpush.bf16.msra.mxu0 0
      %777 = vmatpush.bf16.msra.mxu0 0
      %778 = vmatpush.bf16.msra.mxu0 0
      %779 = vmatpush.bf16.msra.mxu0 0
      %780 = vmatpush.bf16.msra.mxu0 0
      %781 = vmatpush.bf16.msra.mxu0 %v772
      %782 = vmatmul.bf16.gmra.mxu0 %v769
      %v783 = vpop.f32.mrf.mxu0
      %v784 = vadd.f32 0.0, %v783
      %v785 = vpop.f32.mrf.mxu0
      %786 = vdwg.mxu0
      %v788 = vsel %vm660, %v763, 0
      %v791 = vsel %vm664, %v764, 0
      %793 = vmatpush.bf16.msra.mxu0 0
      %794 = vmatpush.bf16.msra.mxu0 0
      %795 = vmatpush.bf16.msra.mxu0 0
      %796 = vmatpush.bf16.msra.mxu0 0
      %797 = vmatpush.bf16.msra.mxu0 0
      %798 = vmatpush.bf16.msra.mxu0 0
      %799 = vmatpush.bf16.msra.mxu0 0
      %800 = vmatpush.bf16.msra.mxu0 %v791
      %801 = vmatmul.bf16.gmra.mxu0 %v788
      %v802 = vpop.f32.mrf.mxu0
      %v803 = vadd.f32 %v784, %v802
      %v804 = vpop.f32.mrf.mxu0
      %805 = vdwg.mxu0
      %v806 = vld [vmem:[%s652 + $0x1] sm:$0xf]
      %v807 = vpack.c.bf16 %v806, %v806
      %v808 = vld [vmem:[%s703] sm:$0xf]
      %v810 = vsel %vm660, %v807, 0
      %v813 = vsel %vm664, %v808, 0
      %815 = vmatpush.bf16.msra.mxu0 0
      %816 = vmatpush.bf16.msra.mxu0 0
      %817 = vmatpush.bf16.msra.mxu0 0
      %818 = vmatpush.bf16.msra.mxu0 0
      %819 = vmatpush.bf16.msra.mxu0 0
      %820 = vmatpush.bf16.msra.mxu0 0
      %821 = vmatpush.bf16.msra.mxu0 0
      %822 = vmatpush.bf16.msra.mxu0 %v813
      %823 = vmatmul.bf16.gmra.mxu0 %v810
      %v824 = vpop.f32.mrf.mxu0
      %v825 = vadd.f32 0.0, %v824
      %v826 = vpop.f32.mrf.mxu0
      %827 = vdwg.mxu0
      %v828 = vadd.f32 %v803, %v825
      %v829 = vld [vmem:[%s630 + $0x2] sm:$0xf]
      %v830 = vpack.c.bf16 %v829, %v829
      %v831 = vld [vmem:[%s728] sm:$0xf]
      %v833 = vsel %vm660, %v830, 0
      %v836 = vsel %vm664, %v831, 0
      %838 = vmatpush.bf16.msra.mxu0 0
      %839 = vmatpush.bf16.msra.mxu0 0
      %840 = vmatpush.bf16.msra.mxu0 0
      %841 = vmatpush.bf16.msra.mxu0 0
      %842 = vmatpush.bf16.msra.mxu0 0
      %843 = vmatpush.bf16.msra.mxu0 0
      %844 = vmatpush.bf16.msra.mxu0 0
      %845 = vmatpush.bf16.msra.mxu0 %v836
      %846 = vmatmul.bf16.gmra.mxu0 %v833
      %v847 = vpop.f32.mrf.mxu0
      %v848 = vadd.f32 0.0, %v847
      %v849 = vpop.f32.mrf.mxu0
      %850 = vdwg.mxu0
      %v851 = vadd.f32 %v828, %v848
      %v852 = vld [vmem:[%s2] sm:$0x1]
      %v854 = vperm.slane %v852, 0
      %v856 = vmul.f32 %v851, %v854
      %v857 = vld [vmem:[%s3] sm:$0x1]
      %v859 = vperm.slane %v857, 0
      %v861 = vadd.f32 %v856, %v859
      %s862 = scalar_lea.vmem [#allocation2], 8
      %863 = vst.msk [vmem:[%s862 + $0x1] sm:$0xf] %vm760, %v861
      %v864 = vld [vmem:[%s862] sm:$0xf]
      %v865 = vpack.c.bf16 %v864, %v864
      %v866 = vld [vmem:[%s4] sm:$0xf]
      %v867 = vld [vmem:[%s4 + $0x4] sm:$0xf]
      %v868 = vld [vmem:[#allocation2 + $0x1] sm:$0xf]
      %v869 = vpack.c.bf16 %v868, %v868
      %s870 = scalar_lea.vmem %s4, 8
      %v871 = vld [vmem:[%s870] sm:$0xf]
      %v872 = vld [vmem:[%s870 + $0x4] sm:$0xf]
      %v875 = vunpack.c.l.b16 %v871
      %v876 = vunpack.c.l.b16 %v872
      %v877 = vpack.c.b16 %v876, %v875
      %vm879 = vcmask 130048
      %v881 = vsel %vm879, %v869, 0
      %883 = vmatpush.bf16.msra.mxu0 0
      %884 = vmatpush.bf16.msra.mxu0 0
      %885 = vmatpush.bf16.msra.mxu0 0
      %886 = vmatpush.bf16.msra.mxu0 0
      %887 = vmatpush.bf16.msra.mxu0 0
      %888 = vmatpush.bf16.msra.mxu0 0
      %889 = vmatpush.bf16.msra.mxu0 0
      %890 = vmatpush.bf16.msra.mxu0 %v877
      %891 = vmatmul.bf16.gmra.mxu0 %v881
      %v892 = vpop.f32.mrf.mxu0
      %v893 = vadd.f32 0.0, %v892
      %v894 = vpop.f32.mrf.mxu0
      %895 = vdwg.mxu0
      %v898 = vunpack.c.l.b16 %v866
      %v899 = vunpack.c.l.b16 %v867
      %v900 = vpack.c.b16 %v899, %v898
      %v903 = vsel %vm879, %v865, 0
      %905 = vmatpush.bf16.msra.mxu0 0
      %906 = vmatpush.bf16.msra.mxu0 0
      %907 = vmatpush.bf16.msra.mxu0 0
      %908 = vmatpush.bf16.msra.mxu0 0
      %909 = vmatpush.bf16.msra.mxu0 0
      %910 = vmatpush.bf16.msra.mxu0 0
      %911 = vmatpush.bf16.msra.mxu0 0
      %912 = vmatpush.bf16.msra.mxu0 %v900
      %913 = vmatmul.bf16.gmra.mxu0 %v903
      %v914 = vpop.f32.mrf.mxu0
      %v915 = vadd.f32 %v893, %v914
      %v916 = vpop.f32.mrf.mxu0
      %917 = vdwg.mxu0
      %v918 = vld [vmem:[%s862 + $0x1] sm:$0xf]
      %v919 = vpack.c.bf16 %v918, %v918
      %s920 = scalar_lea.vmem %s4, 16
      %v921 = vld [vmem:[%s920] sm:$0xf]
      %v922 = vld [vmem:[%s920 + $0x4] sm:$0xf]
      %v925 = vunpack.c.l.b16 %v921
      %v926 = vunpack.c.l.b16 %v922
      %v927 = vpack.c.b16 %v926, %v925
      %v930 = vsel %vm879, %v919, 0
      %932 = vmatpush.bf16.msra.mxu0 0
      %933 = vmatpush.bf16.msra.mxu0 0
      %934 = vmatpush.bf16.msra.mxu0 0
      %935 = vmatpush.bf16.msra.mxu0 0
      %936 = vmatpush.bf16.msra.mxu0 0
      %937 = vmatpush.bf16.msra.mxu0 0
      %938 = vmatpush.bf16.msra.mxu0 0
      %939 = vmatpush.bf16.msra.mxu0 %v927
      %940 = vmatmul.bf16.gmra.mxu0 %v930
      %v941 = vpop.f32.mrf.mxu0
      %v942 = vadd.f32 0.0, %v941
      %v943 = vpop.f32.mrf.mxu0
      %944 = vdwg.mxu0
      %v945 = vadd.f32 %v915, %v942
      %v946 = vld [vmem:[#allocation2 + $0x2] sm:$0xf]
      %v947 = vpack.c.bf16 %v946, %v946
      %s948 = scalar_lea.vmem %s4, 24
      %v949 = vld [vmem:[%s948] sm:$0xf]
      %v950 = vld [vmem:[%s948 + $0x4] sm:$0xf]
      %v953 = vunpack.c.l.b16 %v949
      %v954 = vunpack.c.l.b16 %v950
      %v955 = vpack.c.b16 %v954, %v953
      %v958 = vsel %vm879, %v947, 0
      %960 = vmatpush.bf16.msra.mxu0 0
      %961 = vmatpush.bf16.msra.mxu0 0
      %962 = vmatpush.bf16.msra.mxu0 0
      %963 = vmatpush.bf16.msra.mxu0 0
      %964 = vmatpush.bf16.msra.mxu0 0
      %965 = vmatpush.bf16.msra.mxu0 0
      %966 = vmatpush.bf16.msra.mxu0 0
      %967 = vmatpush.bf16.msra.mxu0 %v955
      %968 = vmatmul.bf16.gmra.mxu0 %v958
      %v969 = vpop.f32.mrf.mxu0
      %v970 = vadd.f32 0.0, %v969
      %v971 = vpop.f32.mrf.mxu0
      %972 = vdwg.mxu0
      %v973 = vadd.f32 %v945, %v970
      %v974 = vld [vmem:[%s5] sm:$0x1]
      %v976 = vperm.slane %v974, 0
      %v978 = vmul.f32 %v973, %v976
      %v979 = vld [vmem:[%s6] sm:$0x1]
      %v981 = vperm.slane %v979, 0
      %v983 = vadd.f32 %v978, %v981
      %v984 = vpack.c.bf16 %v983, %v983
      %v985 = vld [vmem:[%s7] sm:$0xff]
      %v986 = vld [vmem:[%s7 + $0x8] sm:$0xff]
      %v987 = vld [vmem:[%s7 + $0x10] sm:$0xff]
      %v988 = vld [vmem:[%s7 + $0x18] sm:$0xff]
      %v989 = vld [vmem:[%s8] sm:$0x3]
      %v991 = vperm.slane %v989, 0
      %v992 = vperm.slane %v989, 1
      %v999 = vunpack.c.l.b16 %v985
      %v1000 = vunpack.c.h.b16 %v985
      %v1001 = vunpack.c.l.b16 %v986
      %v1002 = vunpack.c.h.b16 %v986
      %v1003 = vunpack.c.l.b16 %v987
      %v1004 = vunpack.c.h.b16 %v987
      %v1005 = vunpack.c.l.b16 %v988
      %v1006 = vunpack.c.h.b16 %v988
      %v1007 = vpack.c.b16 %v1001, %v999
      %v1008 = vpack.c.b16 %v1002, %v1000
      %v1009 = vpack.c.b16 %v1005, %v1003
      %v1010 = vpack.c.b16 %v1006, %v1004
      %vm1015 = vcmask 261120
      %v1017 = vsel %vm1015, %v984, 0
      %1019 = vmatpush.bf16.msra.mxu0 0
      %1020 = vmatpush.bf16.msra.mxu0 0
      %1021 = vmatpush.bf16.msra.mxu0 0
      %1022 = vmatpush.bf16.msra.mxu0 0
      %1023 = vmatpush.bf16.msra.mxu0 0
      %1024 = vmatpush.bf16.msra.mxu0 0
      %1025 = vmatpush.bf16.msra.mxu0 %v1009
      %1026 = vmatpush.bf16.msra.mxu0 %v1007
      %1027 = vmatmul.bf16.gmra.mxu0 %v1017
      %v1028 = vpop.f32.mrf.mxu0
      %v1029 = vadd.f32 %v991, %v1028
      %v1030 = vpop.f32.mrf.mxu0
      %1031 = vdwg.mxu0
      %1032 = vmatpush.bf16.msra.mxu0 0
      %1033 = vmatpush.bf16.msra.mxu0 0
      %1034 = vmatpush.bf16.msra.mxu0 0
      %1035 = vmatpush.bf16.msra.mxu0 0
      %1036 = vmatpush.bf16.msra.mxu0 0
      %1037 = vmatpush.bf16.msra.mxu0 0
      %1038 = vmatpush.bf16.msra.mxu0 %v1010
      %1039 = vmatpush.bf16.msra.mxu0 %v1008
      %1040 = vmatmul.bf16.gmra.mxu0 %v1017
      %v1041 = vpop.f32.mrf.mxu0
      %v1042 = vadd.f32 %v992, %v1041
      %v1043 = vpop.f32.mrf.mxu0
      %1044 = vdwg.mxu0
      %v1045 = vld [vmem:[%s9] sm:$0xff]
      %v1046 = vld [vmem:[%s9 + $0x8] sm:$0xff]
      %v1047 = vld [vmem:[%s9 + $0x10] sm:$0xff]
      %v1048 = vld [vmem:[%s9 + $0x18] sm:$0xff]
      %v1049 = vld [vmem:[%s9 + $0x20] sm:$0xff]
      %v1050 = vld [vmem:[%s9 + $0x28] sm:$0xff]
      %v1051 = vld [vmem:[%s9 + $0x30] sm:$0xff]
      %v1052 = vld [vmem:[%s9 + $0x38] sm:$0xff]
      %v1053 = vld [vmem:[%s9 + $0x40] sm:$0xff]
      %v1054 = vld [vmem:[%s9 + $0x48] sm:$0xff]
      %v1055 = vld [vmem:[%s9 + $0x50] sm:$0xff]
      %v1056 = vld [vmem:[%s9 + $0x58] sm:$0xff]
      %v1057 = vld [vmem:[%s9 + $0x60] sm:$0xff]
      %v1058 = vld [vmem:[%s9 + $0x68] sm:$0xff]
      %v1059 = vld [vmem:[%s9 + $0x70] sm:$0xff]
      %v1060 = vld [vmem:[%s9 + $0x78] sm:$0xff]
      %v1061 = vld [vmem:[%s9 + $0x80] sm:$0xff]
      %v1062 = vld [vmem:[%s9 + $0x88] sm:$0xff]
      %v1063 = vld [vmem:[%s9 + $0x90] sm:$0xff]
      %v1064 = vld [vmem:[%s9 + $0x98] sm:$0xff]
      %v1065 = vld [vmem:[%s9 + $0xa0] sm:$0xff]
      %v1066 = vld [vmem:[%s9 + $0xa8] sm:$0xff]
      %v1067 = vld [vmem:[%s9 + $0xb0] sm:$0xff]
      %v1068 = vld [vmem:[%s9 + $0xb8] sm:$0xff]
      %v1069 = vld [vmem:[%s9 + $0xc0] sm:$0xff]
      %v1070 = vld [vmem:[%s9 + $0xc8] sm:$0xff]
      %v1071 = vld [vmem:[%s9 + $0xd0] sm:$0xff]
      %v1072 = vld [vmem:[%s9 + $0xd8] sm:$0xff]
      %v1073 = vld [vmem:[%s9 + $0xe0] sm:$0xff]
      %v1074 = vld [vmem:[%s9 + $0xe8] sm:$0xff]
      %v1075 = vld [vmem:[%s9 + $0xf0] sm:$0xff]
      %v1076 = vld [vmem:[%s9 + $0xf8] sm:$0xff]
      %vm1077 = vcmask 523264
      %v1079 = vsel %vm1077, %v1042, 0
      %v1082 = vsel %vm1077, %v1046, 0
      %v1085 = vsel %vm1077, %v1048, 0
      %v1088 = vsel %vm1077, %v1050, 0
      %v1091 = vsel %vm1077, %v1052, 0
      %v1094 = vsel %vm1077, %v1054, 0
      %v1097 = vsel %vm1077, %v1056, 0
      %v1100 = vsel %vm1077, %v1058, 0
      %v1103 = vsel %vm1077, %v1060, 0
      %v1106 = vsel %vm1077, %v1062, 0
      %v1109 = vsel %vm1077, %v1064, 0
      %v1112 = vsel %vm1077, %v1066, 0
      %v1115 = vsel %vm1077, %v1068, 0
      %v1118 = vsel %vm1077, %v1070, 0
      %v1121 = vsel %vm1077, %v1072, 0
      %v1124 = vsel %vm1077, %v1074, 0
      %v1127 = vsel %vm1077, %v1076, 0
      %1129 = vmatpush.xpose.msra.mxu0 %v1075
      %1130 = vmatpush.xpose.msra.mxu0 %v1073
      %1131 = vmatpush.xpose.msra.mxu0 %v1071
      %1132 = vmatpush.xpose.msra.mxu0 %v1069
      %1133 = vmatpush.xpose.msra.mxu0 %v1067
      %1134 = vmatpush.xpose.msra.mxu0 %v1065
      %1135 = vmatpush.xpose.msra.mxu0 %v1063
      %1136 = vmatpush.xpose.msra.mxu0 %v1061
      %1137 = vmatpush.xpose.msra.mxu0 %v1059
      %1138 = vmatpush.xpose.msra.mxu0 %v1057
      %1139 = vmatpush.xpose.msra.mxu0 %v1055
      %1140 = vmatpush.xpose.msra.mxu0 %v1053
      %1141 = vmatpush.xpose.msra.mxu0 %v1051
      %1142 = vmatpush.xpose.msra.mxu0 %v1049
      %1143 = vmatpush.xpose.msra.mxu0 %v1047
      %1144 = vmatpush.xpose.msra.mxu0 %v1045
      %1145 = vmatmul.f32.gmra.mxu0 %v1029
      %v1146 = vpop.f32.mrf.mxu0
      %v1147 = vadd.f32 0.0, %v1146
      %1148 = vdwg.mxu0
      %1149 = vmatpush.xpose.msra.mxu0 %v1127
      %1150 = vmatpush.xpose.msra.mxu0 %v1124
      %1151 = vmatpush.xpose.msra.mxu0 %v1121
      %1152 = vmatpush.xpose.msra.mxu0 %v1118
      %1153 = vmatpush.xpose.msra.mxu0 %v1115
      %1154 = vmatpush.xpose.msra.mxu0 %v1112
      %1155 = vmatpush.xpose.msra.mxu0 %v1109
      %1156 = vmatpush.xpose.msra.mxu0 %v1106
      %1157 = vmatpush.xpose.msra.mxu0 %v1103
      %1158 = vmatpush.xpose.msra.mxu0 %v1100
      %1159 = vmatpush.xpose.msra.mxu0 %v1097
      %1160 = vmatpush.xpose.msra.mxu0 %v1094
      %1161 = vmatpush.xpose.msra.mxu0 %v1091
      %1162 = vmatpush.xpose.msra.mxu0 %v1088
      %1163 = vmatpush.xpose.msra.mxu0 %v1085
      %1164 = vmatpush.xpose.msra.mxu0 %v1082
      %1165 = vmatmul.f32.gmra.mxu0 %v1079
      %v1166 = vpop.f32.mrf.mxu0
      %v1167 = vadd.f32 %v1147, %v1166
      %1168 = vdwg.mxu0
      %v1169 = vld [vmem:[%s10] sm:$0x1]
      %v1170 = vmul.f32 %v1167, 2.0
      %v1172 = vperm.slane %v1169, 0
      %v1174 = vsub.f32 %v1172, %v1170
      %v1175 = vsel %vm664, %v1174, inf
      %1176 = vmin.xlane.f32.xlu0 %v1175
      %v1177 = vpop.xlane.xlu0 %1176
      %v1178 = vlaneseq
      %v1179 = vand.u32 %v1178, 127
      %vm1180 = vcmp.le.f32.partialorder %v1174, %v1177
      %v1181 = vsel %vm1180, %v1179, 128
      %v1182 = vsel %vm664, %v1181, 2147483647
      %v1183 = vand.u32 %v1182, 65535
      %v1184 = vshra.s32 %v1182, 16
      %v1185 = vcvt.s32.f32 %v1183
      %v1186 = vcvt.s32.f32 %v1184
      %1187 = vmin.xlane.f32.xlu0 %v1186
      %v1188 = vpop.xlane.xlu0 %1187
      %vm1189 = vcmp.eq.f32.partialorder %v1186, %v1188
      %v1190 = vsel %vm1189, %v1185, inf
      %1191 = vmin.xlane.f32.xlu0 %v1190
      %v1192 = vpop.xlane.xlu0 %1191
      %v1193 = vcvt.f32.s32 %v1192
      %v1194 = vcvt.f32.s32 %v1188
      %v1195 = vshll.u32 %v1194, 16
      %v1196 = vadd.s32 %v1195, %v1193
      %vm1197 = vcmp.eq.s32.totalorder %v1179, %v1196
      %v1198 = vsel %vm1197, 1, 0
      %v1199 = vcvt.s32.f32 %v1198
      %1200 = vmatpush.msra.mxu0 %v1075
      %1201 = vmatpush.msra.mxu0 %v1073
      %1202 = vmatpush.msra.mxu0 %v1071
      %1203 = vmatpush.msra.mxu0 %v1069
      %1204 = vmatpush.msra.mxu0 %v1067
      %1205 = vmatpush.msra.mxu0 %v1065
      %1206 = vmatpush.msra.mxu0 %v1063
      %1207 = vmatpush.msra.mxu0 %v1061
      %1208 = vmatpush.msra.mxu0 %v1059
      %1209 = vmatpush.msra.mxu0 %v1057
      %1210 = vmatpush.msra.mxu0 %v1055
      %1211 = vmatpush.msra.mxu0 %v1053
      %1212 = vmatpush.msra.mxu0 %v1051
      %1213 = vmatpush.msra.mxu0 %v1049
      %1214 = vmatpush.msra.mxu0 %v1047
      %1215 = vmatpush.msra.mxu0 %v1045
      %1216 = vmatmul.f32.gmra.mxu0 %v1199
      %v1217 = vpop.f32.mrf.mxu0
      %v1218 = vadd.f32 0.0, %v1217
      %1219 = vdwg.mxu0
      %1220 = vmatpush.msra.mxu0 %v1076
      %1221 = vmatpush.msra.mxu0 %v1074
      %1222 = vmatpush.msra.mxu0 %v1072
      %1223 = vmatpush.msra.mxu0 %v1070
      %1224 = vmatpush.msra.mxu0 %v1068
      %1225 = vmatpush.msra.mxu0 %v1066
      %1226 = vmatpush.msra.mxu0 %v1064
      %1227 = vmatpush.msra.mxu0 %v1062
      %1228 = vmatpush.msra.mxu0 %v1060
      %1229 = vmatpush.msra.mxu0 %v1058
      %1230 = vmatpush.msra.mxu0 %v1056
      %1231 = vmatpush.msra.mxu0 %v1054
      %1232 = vmatpush.msra.mxu0 %v1052
      %1233 = vmatpush.msra.mxu0 %v1050
      %1234 = vmatpush.msra.mxu0 %v1048
      %1235 = vmatpush.msra.mxu0 %v1046
      %1236 = vmatmul.f32.gmra.mxu0 %v1199
      %v1237 = vpop.f32.mrf.mxu0
      %v1238 = vadd.f32 0.0, %v1237
      %1239 = vdwg.mxu0
      %v1240 = vsub.f32 %v1218, %v1029
      %v1241 = vsub.f32 %v1238, %v1042
      %v1242 = vmul.f32 %v1240, %v1240
      %v1243 = vmul.f32 %v1241, %v1241
      %v1244 = vsel %vm664, %v1242, 0.0
      %vm1245 = vcmask 519168
      %v1246 = vsel %vm1245, %v1243, 0.0
      %v1247 = vadd.f32 %v1244, %v1246
      %1248 = vadd.xlane.f32.xlu0 %v1247
      %v1249 = vpop.xlane.xlu0 %1248
      %v1250 = vrot.slane %v1249, 4
      %v1251 = vadd.f32 %v1249, %v1250
      %v1252 = vrot.slane %v1251, 2
      %v1253 = vadd.f32 %v1251, %v1252
      %v1254 = vrot.slane %v1253, 1
      %v1255 = vadd.f32 %v1253, %v1254
      %s1256 = vtos %v1255
      %v1257 = vstv %s1256
      %1258 = vst [vmem:[%s638] sm:$0x1] %v1257
      %v1259 = vpack.c.bf16 %v1218, %v1218
      %v1260 = vpack.c.bf16 %v1238, %v1238
      %v1261 = vld [vmem:[%s11] sm:$0xf]
      %v1262 = vld [vmem:[%s11 + $0x4] sm:$0xf]
      %v1263 = vld [vmem:[%s11 + $0x8] sm:$0xf]
      %v1264 = vld [vmem:[%s11 + $0xc] sm:$0xf]
      %v1265 = vld [vmem:[%s11 + $0x10] sm:$0xf]
      %v1266 = vld [vmem:[%s11 + $0x14] sm:$0xf]
      %v1267 = vld [vmem:[%s11 + $0x18] sm:$0xf]
      %v1268 = vld [vmem:[%s11 + $0x1c] sm:$0xf]
      %v1269 = vld [vmem:[%s11 + $0x20] sm:$0xf]
      %v1270 = vld [vmem:[%s11 + $0x24] sm:$0xf]
      %v1271 = vld [vmem:[%s11 + $0x28] sm:$0xf]
      %v1272 = vld [vmem:[%s11 + $0x2c] sm:$0xf]
      %v1273 = vld [vmem:[%s11 + $0x30] sm:$0xf]
      %v1274 = vld [vmem:[%s11 + $0x34] sm:$0xf]
      %v1275 = vld [vmem:[%s11 + $0x38] sm:$0xf]
      %v1276 = vld [vmem:[%s11 + $0x3c] sm:$0xf]
      %v1277 = vld [vmem:[%s11 + $0x40] sm:$0xf]
      %v1278 = vld [vmem:[%s11 + $0x44] sm:$0xf]
      %v1279 = vld [vmem:[%s11 + $0x48] sm:$0xf]
      %v1280 = vld [vmem:[%s11 + $0x4c] sm:$0xf]
      %v1281 = vld [vmem:[%s11 + $0x50] sm:$0xf]
      %v1282 = vld [vmem:[%s11 + $0x54] sm:$0xf]
      %v1283 = vld [vmem:[%s11 + $0x58] sm:$0xf]
      %v1284 = vld [vmem:[%s11 + $0x5c] sm:$0xf]
      %v1285 = vld [vmem:[%s12] sm:$0x1]
      %v1287 = vperm.slane %v1285, 0
      %v1313 = vunpack.c.l.b16 %v1261
      %v1314 = vunpack.c.l.b16 %v1262
      %v1315 = vunpack.c.l.b16 %v1263
      %v1316 = vunpack.c.l.b16 %v1264
      %v1317 = vunpack.c.l.b16 %v1265
      %v1318 = vunpack.c.l.b16 %v1266
      %v1319 = vunpack.c.l.b16 %v1267
      %v1320 = vunpack.c.l.b16 %v1268
      %v1321 = vunpack.c.l.b16 %v1269
      %v1322 = vunpack.c.l.b16 %v1270
      %v1323 = vunpack.c.l.b16 %v1271
      %v1324 = vunpack.c.l.b16 %v1272
      %v1325 = vunpack.c.l.b16 %v1273
      %v1326 = vunpack.c.l.b16 %v1274
      %v1327 = vunpack.c.l.b16 %v1275
      %v1328 = vunpack.c.l.b16 %v1276
      %v1329 = vunpack.c.l.b16 %v1277
      %v1330 = vunpack.c.l.b16 %v1278
      %v1331 = vunpack.c.l.b16 %v1279
      %v1332 = vunpack.c.l.b16 %v1280
      %v1333 = vunpack.c.l.b16 %v1281
      %v1334 = vunpack.c.l.b16 %v1282
      %v1335 = vunpack.c.l.b16 %v1283
      %v1336 = vunpack.c.l.b16 %v1284
      %v1337 = vpack.c.b16 %v1314, %v1313
      %v1338 = vpack.c.b16 %v1316, %v1315
      %v1339 = vpack.c.b16 %v1318, %v1317
      %v1340 = vpack.c.b16 %v1320, %v1319
      %v1341 = vpack.c.b16 %v1322, %v1321
      %v1342 = vpack.c.b16 %v1324, %v1323
      %v1343 = vpack.c.b16 %v1326, %v1325
      %v1344 = vpack.c.b16 %v1328, %v1327
      %v1345 = vpack.c.b16 %v1330, %v1329
      %v1346 = vpack.c.b16 %v1332, %v1331
      %v1347 = vpack.c.b16 %v1334, %v1333
      %v1348 = vpack.c.b16 %v1336, %v1335
      %v1362 = vsel %vm1077, %v1260, 0
      %1364 = vmatpush.bf16.msra.mxu0 %v1344
      %1365 = vmatpush.bf16.msra.mxu0 %v1343
      %1366 = vmatpush.bf16.msra.mxu0 %v1342
      %1367 = vmatpush.bf16.msra.mxu0 %v1341
      %1368 = vmatpush.bf16.msra.mxu0 %v1340
      %1369 = vmatpush.bf16.msra.mxu0 %v1339
      %1370 = vmatpush.bf16.msra.mxu0 %v1338
      %1371 = vmatpush.bf16.msra.mxu0 %v1337
      %1372 = vmatmul.bf16.gmra.mxu0 %v1259
      %v1373 = vpop.f32.mrf.mxu0
      %v1374 = vadd.f32 %v1287, %v1373
      %v1375 = vpop.f32.mrf.mxu0
      %1376 = vdwg.mxu0
      %1377 = vmatpush.bf16.msra.mxu0 0
      %1378 = vmatpush.bf16.msra.mxu0 0
      %1379 = vmatpush.bf16.msra.mxu0 0
      %1380 = vmatpush.bf16.msra.mxu0 0
      %1381 = vmatpush.bf16.msra.mxu0 %v1348
      %1382 = vmatpush.bf16.msra.mxu0 %v1347
      %1383 = vmatpush.bf16.msra.mxu0 %v1346
      %1384 = vmatpush.bf16.msra.mxu0 %v1345
      %1385 = vmatmul.bf16.gmra.mxu0 %v1362
      %v1386 = vpop.f32.mrf.mxu0
      %v1387 = vadd.f32 %v1374, %v1386
      %v1388 = vpop.f32.mrf.mxu0
      %1389 = vdwg.mxu0
      %vm1390 = vcmask 257024
      %1391 = vst.msk [vmem:[#allocation3 + $0x1] sm:$0xf] %vm1390, %v1387
      %v1392 = vld [vmem:[#allocation3 + $0x1] sm:$0xf]
      %v1393 = vpack.c.bf16 %v1392, %v1392
      %s1394 = scalar_lea.vmem %s13, 16
      %v1395 = vld [vmem:[%s1394] sm:$0xf]
      %v1396 = vld [vmem:[%s1394 + $0x4] sm:$0xf]
      %v1397 = vld [vmem:[%s1394 + $0x8] sm:$0xf]
      %v1398 = vld [vmem:[%s1394 + $0xc] sm:$0xf]
      %v1399 = vld [vmem:[#allocation3] sm:$0xf]
      %v1400 = vpack.c.bf16 %v1399, %v1399
      %s1401 = scalar_lea.vmem %s13, 48
      %v1402 = vld [vmem:[%s1401] sm:$0xf]
      %v1403 = vld [vmem:[%s1401 + $0x4] sm:$0xf]
      %v1404 = vld [vmem:[%s1401 + $0x8] sm:$0xf]
      %v1405 = vld [vmem:[%s1401 + $0xc] sm:$0xf]
      %v1410 = vunpack.c.l.b16 %v1402
      %v1411 = vunpack.c.l.b16 %v1403
      %v1412 = vunpack.c.l.b16 %v1404
      %v1413 = vunpack.c.l.b16 %v1405
      %v1414 = vpack.c.b16 %v1411, %v1410
      %v1415 = vpack.c.b16 %v1413, %v1412
      %v1419 = vsel %vm1015, %v1400, 0
      %1421 = vmatpush.bf16.msra.mxu0 0
      %1422 = vmatpush.bf16.msra.mxu0 0
      %1423 = vmatpush.bf16.msra.mxu0 0
      %1424 = vmatpush.bf16.msra.mxu0 0
      %1425 = vmatpush.bf16.msra.mxu0 0
      %1426 = vmatpush.bf16.msra.mxu0 0
      %1427 = vmatpush.bf16.msra.mxu0 %v1415
      %1428 = vmatpush.bf16.msra.mxu0 %v1414
      %1429 = vmatmul.bf16.gmra.mxu0 %v1419
      %v1430 = vpop.f32.mrf.mxu0
      %v1431 = vadd.f32 0.0, %v1430
      %v1432 = vpop.f32.mrf.mxu0
      %1433 = vdwg.mxu0
      %v1438 = vunpack.c.l.b16 %v1395
      %v1439 = vunpack.c.l.b16 %v1396
      %v1440 = vunpack.c.l.b16 %v1397
      %v1441 = vunpack.c.l.b16 %v1398
      %v1442 = vpack.c.b16 %v1439, %v1438
      %v1443 = vpack.c.b16 %v1441, %v1440
      %v1447 = vsel %vm1015, %v1393, 0
      %1449 = vmatpush.bf16.msra.mxu0 0
      %1450 = vmatpush.bf16.msra.mxu0 0
      %1451 = vmatpush.bf16.msra.mxu0 0
      %1452 = vmatpush.bf16.msra.mxu0 0
      %1453 = vmatpush.bf16.msra.mxu0 0
      %1454 = vmatpush.bf16.msra.mxu0 0
      %1455 = vmatpush.bf16.msra.mxu0 %v1443
      %1456 = vmatpush.bf16.msra.mxu0 %v1442
      %1457 = vmatmul.bf16.gmra.mxu0 %v1447
      %v1458 = vpop.f32.mrf.mxu0
      %v1459 = vadd.f32 %v1431, %v1458
      %v1460 = vpop.f32.mrf.mxu0
      %1461 = vdwg.mxu0
      %v1462 = vld [vmem:[%s14] sm:$0x1]
      %v1464 = vperm.slane %v1462, 0
      %v1466 = vmul.f32 %v1459, %v1464
      %v1467 = vld [vmem:[%s15] sm:$0x1]
      %v1469 = vperm.slane %v1467, 0
      %v1471 = vadd.f32 %v1466, %v1469
      %1472 = vst.msk [vmem:[#allocation4 + $0x1] sm:$0xf] %vm760, %v1471
      %v1473 = vld [vmem:[#allocation3 + $0x2] sm:$0xf]
      %v1474 = vpack.c.bf16 %v1473, %v1473
      %v1475 = vld [vmem:[%s13] sm:$0xf]
      %v1476 = vld [vmem:[%s13 + $0x4] sm:$0xf]
      %v1477 = vld [vmem:[%s13 + $0x8] sm:$0xf]
      %v1478 = vld [vmem:[%s13 + $0xc] sm:$0xf]
      %v1479 = vld [vmem:[#allocation3 + $0x1] sm:$0xf]
      %v1480 = vpack.c.bf16 %v1479, %v1479
      %s1481 = scalar_lea.vmem %s13, 32
      %v1482 = vld [vmem:[%s1481] sm:$0xf]
      %v1483 = vld [vmem:[%s1481 + $0x4] sm:$0xf]
      %v1484 = vld [vmem:[%s1481 + $0x8] sm:$0xf]
      %v1485 = vld [vmem:[%s1481 + $0xc] sm:$0xf]
      %v1490 = vunpack.c.l.b16 %v1482
      %v1491 = vunpack.c.l.b16 %v1483
      %v1492 = vunpack.c.l.b16 %v1484
      %v1493 = vunpack.c.l.b16 %v1485
      %v1494 = vpack.c.b16 %v1491, %v1490
      %v1495 = vpack.c.b16 %v1493, %v1492
      %v1499 = vsel %vm1015, %v1480, 0
      %1501 = vmatpush.bf16.msra.mxu0 0
      %1502 = vmatpush.bf16.msra.mxu0 0
      %1503 = vmatpush.bf16.msra.mxu0 0
      %1504 = vmatpush.bf16.msra.mxu0 0
      %1505 = vmatpush.bf16.msra.mxu0 0
      %1506 = vmatpush.bf16.msra.mxu0 0
      %1507 = vmatpush.bf16.msra.mxu0 %v1495
      %1508 = vmatpush.bf16.msra.mxu0 %v1494
      %1509 = vmatmul.bf16.gmra.mxu0 %v1499
      %v1510 = vpop.f32.mrf.mxu0
      %v1511 = vadd.f32 0.0, %v1510
      %v1512 = vpop.f32.mrf.mxu0
      %1513 = vdwg.mxu0
      %v1518 = vunpack.c.l.b16 %v1475
      %v1519 = vunpack.c.l.b16 %v1476
      %v1520 = vunpack.c.l.b16 %v1477
      %v1521 = vunpack.c.l.b16 %v1478
      %v1522 = vpack.c.b16 %v1519, %v1518
      %v1523 = vpack.c.b16 %v1521, %v1520
      %v1527 = vsel %vm1015, %v1474, 0
      %1529 = vmatpush.bf16.msra.mxu0 0
      %1530 = vmatpush.bf16.msra.mxu0 0
      %1531 = vmatpush.bf16.msra.mxu0 0
      %1532 = vmatpush.bf16.msra.mxu0 0
      %1533 = vmatpush.bf16.msra.mxu0 0
      %1534 = vmatpush.bf16.msra.mxu0 0
      %1535 = vmatpush.bf16.msra.mxu0 %v1523
      %1536 = vmatpush.bf16.msra.mxu0 %v1522
      %1537 = vmatmul.bf16.gmra.mxu0 %v1527
      %v1538 = vpop.f32.mrf.mxu0
      %v1539 = vadd.f32 %v1511, %v1538
      %v1540 = vpop.f32.mrf.mxu0
      %1541 = vdwg.mxu0
      %v1542 = vld [vmem:[%s14] sm:$0x1]
      %v1544 = vperm.slane %v1542, 0
      %v1546 = vmul.f32 %v1539, %v1544
      %v1547 = vld [vmem:[%s15] sm:$0x1]
      %v1549 = vperm.slane %v1547, 0
      %v1551 = vadd.f32 %v1546, %v1549
      %s1552 = scalar_lea.vmem [#allocation4], 8
      %1553 = vst.msk [vmem:[%s1552 + $0x1] sm:$0xf] %vm760, %v1551
      %v1554 = vld [vmem:[#allocation4 + $0x1] sm:$0xf]
      %v1555 = vpack.c.bf16 %v1554, %v1554
      %s1556 = scalar_lea.vmem %s16, 8
      %v1557 = vld [vmem:[%s1556] sm:$0xf]
      %v1558 = vld [vmem:[%s1556 + $0x4] sm:$0xf]
      %v1559 = vld [vmem:[%s1552] sm:$0xf]
      %v1560 = vpack.c.bf16 %v1559, %v1559
      %s1561 = scalar_lea.vmem %s16, 24
      %v1562 = vld [vmem:[%s1561] sm:$0xf]
      %v1563 = vld [vmem:[%s1561 + $0x4] sm:$0xf]
      %v1566 = vunpack.c.l.b16 %v1562
      %v1567 = vunpack.c.l.b16 %v1563
      %v1568 = vpack.c.b16 %v1567, %v1566
      %v1571 = vsel %vm879, %v1560, 0
      %1573 = vmatpush.bf16.msra.mxu0 0
      %1574 = vmatpush.bf16.msra.mxu0 0
      %1575 = vmatpush.bf16.msra.mxu0 0
      %1576 = vmatpush.bf16.msra.mxu0 0
      %1577 = vmatpush.bf16.msra.mxu0 0
      %1578 = vmatpush.bf16.msra.mxu0 0
      %1579 = vmatpush.bf16.msra.mxu0 0
      %1580 = vmatpush.bf16.msra.mxu0 %v1568
      %1581 = vmatmul.bf16.gmra.mxu0 %v1571
      %v1582 = vpop.f32.mrf.mxu0
      %v1583 = vadd.f32 0.0, %v1582
      %v1584 = vpop.f32.mrf.mxu0
      %1585 = vdwg.mxu0
      %v1588 = vunpack.c.l.b16 %v1557
      %v1589 = vunpack.c.l.b16 %v1558
      %v1590 = vpack.c.b16 %v1589, %v1588
      %v1593 = vsel %vm879, %v1555, 0
      %1595 = vmatpush.bf16.msra.mxu0 0
      %1596 = vmatpush.bf16.msra.mxu0 0
      %1597 = vmatpush.bf16.msra.mxu0 0
      %1598 = vmatpush.bf16.msra.mxu0 0
      %1599 = vmatpush.bf16.msra.mxu0 0
      %1600 = vmatpush.bf16.msra.mxu0 0
      %1601 = vmatpush.bf16.msra.mxu0 0
      %1602 = vmatpush.bf16.msra.mxu0 %v1590
      %1603 = vmatmul.bf16.gmra.mxu0 %v1593
      %v1604 = vpop.f32.mrf.mxu0
      %v1605 = vadd.f32 %v1583, %v1604
      %v1606 = vpop.f32.mrf.mxu0
      %1607 = vdwg.mxu0
      %v1608 = vld [vmem:[%s17] sm:$0x1]
      %v1610 = vperm.slane %v1608, 0
      %v1612 = vmul.f32 %v1605, %v1610
      %v1613 = vld [vmem:[%s18] sm:$0x1]
      %v1615 = vperm.slane %v1613, 0
      %v1617 = vadd.f32 %v1612, %v1615
      %1618 = vst.msk [vmem:[%s635] sm:$0xf] %vm647, %v1617
      %v1619 = vld [vmem:[#allocation4 + $0x1] sm:$0xf]
      %v1620 = vpack.c.bf16 %v1619, %v1619
      %s1621 = scalar_lea.vmem %s16, 16
      %v1622 = vld [vmem:[%s1621] sm:$0xf]
      %v1623 = vld [vmem:[%s1621 + $0x4] sm:$0xf]
      %v1624 = vld [vmem:[%s1552 + $0x1] sm:$0xf]
      %v1625 = vpack.c.bf16 %v1624, %v1624
      %v1626 = vld [vmem:[%s16] sm:$0xf]
      %v1627 = vld [vmem:[%s16 + $0x4] sm:$0xf]
      %v1630 = vunpack.c.l.b16 %v1626
      %v1631 = vunpack.c.l.b16 %v1627
      %v1632 = vpack.c.b16 %v1631, %v1630
      %v1635 = vsel %vm879, %v1625, 0
      %1637 = vmatpush.bf16.msra.mxu0 0
      %1638 = vmatpush.bf16.msra.mxu0 0
      %1639 = vmatpush.bf16.msra.mxu0 0
      %1640 = vmatpush.bf16.msra.mxu0 0
      %1641 = vmatpush.bf16.msra.mxu0 0
      %1642 = vmatpush.bf16.msra.mxu0 0
      %1643 = vmatpush.bf16.msra.mxu0 0
      %1644 = vmatpush.bf16.msra.mxu0 %v1632
      %1645 = vmatmul.bf16.gmra.mxu0 %v1635
      %v1646 = vpop.f32.mrf.mxu0
      %v1647 = vadd.f32 0.0, %v1646
      %v1648 = vpop.f32.mrf.mxu0
      %1649 = vdwg.mxu0
      %v1652 = vunpack.c.l.b16 %v1622
      %v1653 = vunpack.c.l.b16 %v1623
      %v1654 = vpack.c.b16 %v1653, %v1652
      %v1657 = vsel %vm879, %v1620, 0
      %1659 = vmatpush.bf16.msra.mxu0 0
      %1660 = vmatpush.bf16.msra.mxu0 0
      %1661 = vmatpush.bf16.msra.mxu0 0
      %1662 = vmatpush.bf16.msra.mxu0 0
      %1663 = vmatpush.bf16.msra.mxu0 0
      %1664 = vmatpush.bf16.msra.mxu0 0
      %1665 = vmatpush.bf16.msra.mxu0 0
      %1666 = vmatpush.bf16.msra.mxu0 %v1654
      %1667 = vmatmul.bf16.gmra.mxu0 %v1657
      %v1668 = vpop.f32.mrf.mxu0
      %v1669 = vadd.f32 %v1647, %v1668
      %v1670 = vpop.f32.mrf.mxu0
      %1671 = vdwg.mxu0
      %v1672 = vld [vmem:[%s17] sm:$0x1]
      %v1674 = vperm.slane %v1672, 0
      %v1676 = vmul.f32 %v1669, %v1674
      %v1677 = vld [vmem:[%s18] sm:$0x1]
      %v1679 = vperm.slane %v1677, 0
      %v1681 = vadd.f32 %v1676, %v1679
      %s1682 = scalar_lea.vmem %s635, 4
      %1683 = vst.msk [vmem:[%s1682] sm:$0xf] %vm647, %v1681
      %v1684 = vld [vmem:[#allocation4 + $0x1] sm:$0xf]
      %v1685 = vpack.c.bf16 %v1684, %v1684
      %v1686 = vld [vmem:[%s1561] sm:$0xf]
      %v1687 = vld [vmem:[%s1561 + $0x4] sm:$0xf]
      %v1688 = vld [vmem:[%s1552 + $0x1] sm:$0xf]
      %v1689 = vpack.c.bf16 %v1688, %v1688
      %v1690 = vld [vmem:[%s1556] sm:$0xf]
      %v1691 = vld [vmem:[%s1556 + $0x4] sm:$0xf]
      %v1694 = vunpack.c.l.b16 %v1690
      %v1695 = vunpack.c.l.b16 %v1691
      %v1696 = vpack.c.b16 %v1695, %v1694
      %v1699 = vsel %vm879, %v1689, 0
      %1701 = vmatpush.bf16.msra.mxu0 0
      %1702 = vmatpush.bf16.msra.mxu0 0
      %1703 = vmatpush.bf16.msra.mxu0 0
      %1704 = vmatpush.bf16.msra.mxu0 0
      %1705 = vmatpush.bf16.msra.mxu0 0
      %1706 = vmatpush.bf16.msra.mxu0 0
      %1707 = vmatpush.bf16.msra.mxu0 0
      %1708 = vmatpush.bf16.msra.mxu0 %v1696
      %1709 = vmatmul.bf16.gmra.mxu0 %v1699
      %v1710 = vpop.f32.mrf.mxu0
      %v1711 = vadd.f32 0.0, %v1710
      %v1712 = vpop.f32.mrf.mxu0
      %1713 = vdwg.mxu0
      %v1716 = vunpack.c.l.b16 %v1686
      %v1717 = vunpack.c.l.b16 %v1687
      %v1718 = vpack.c.b16 %v1717, %v1716
      %v1721 = vsel %vm879, %v1685, 0
      %1723 = vmatpush.bf16.msra.mxu0 0
      %1724 = vmatpush.bf16.msra.mxu0 0
      %1725 = vmatpush.bf16.msra.mxu0 0
      %1726 = vmatpush.bf16.msra.mxu0 0
      %1727 = vmatpush.bf16.msra.mxu0 0
      %1728 = vmatpush.bf16.msra.mxu0 0
      %1729 = vmatpush.bf16.msra.mxu0 0
      %1730 = vmatpush.bf16.msra.mxu0 %v1718
      %1731 = vmatmul.bf16.gmra.mxu0 %v1721
      %v1732 = vpop.f32.mrf.mxu0
      %v1733 = vadd.f32 %v1711, %v1732
      %v1734 = vpop.f32.mrf.mxu0
      %1735 = vdwg.mxu0
      %v1736 = vld [vmem:[%s17] sm:$0x1]
      %v1738 = vperm.slane %v1736, 0
      %v1740 = vmul.f32 %v1733, %v1738
      %v1741 = vld [vmem:[%s18] sm:$0x1]
      %v1743 = vperm.slane %v1741, 0
      %v1745 = vadd.f32 %v1740, %v1743
      %s1746 = scalar_lea.vmem %s635, 8
      %1747 = vst.msk [vmem:[%s1746] sm:$0xf] %vm647, %v1745
      %v1748 = vld [vmem:[#allocation4 + $0x2] sm:$0xf]
      %v1749 = vpack.c.bf16 %v1748, %v1748
      %v1750 = vld [vmem:[%s16] sm:$0xf]
      %v1751 = vld [vmem:[%s16 + $0x4] sm:$0xf]
      %v1752 = vld [vmem:[%s1552 + $0x1] sm:$0xf]
      %v1753 = vpack.c.bf16 %v1752, %v1752
      %v1754 = vld [vmem:[%s1621] sm:$0xf]
      %v1755 = vld [vmem:[%s1621 + $0x4] sm:$0xf]
      %v1758 = vunpack.c.l.b16 %v1754
      %v1759 = vunpack.c.l.b16 %v1755
      %v1760 = vpack.c.b16 %v1759, %v1758
      %v1763 = vsel %vm879, %v1753, 0
      %1765 = vmatpush.bf16.msra.mxu0 0
      %1766 = vmatpush.bf16.msra.mxu0 0
      %1767 = vmatpush.bf16.msra.mxu0 0
      %1768 = vmatpush.bf16.msra.mxu0 0
      %1769 = vmatpush.bf16.msra.mxu0 0
      %1770 = vmatpush.bf16.msra.mxu0 0
      %1771 = vmatpush.bf16.msra.mxu0 0
      %1772 = vmatpush.bf16.msra.mxu0 %v1760
      %1773 = vmatmul.bf16.gmra.mxu0 %v1763
      %v1774 = vpop.f32.mrf.mxu0
      %v1775 = vadd.f32 0.0, %v1774
      %v1776 = vpop.f32.mrf.mxu0
      %1777 = vdwg.mxu0
      %v1780 = vunpack.c.l.b16 %v1750
      %v1781 = vunpack.c.l.b16 %v1751
      %v1782 = vpack.c.b16 %v1781, %v1780
      %v1785 = vsel %vm879, %v1749, 0
      %1787 = vmatpush.bf16.msra.mxu0 0
      %1788 = vmatpush.bf16.msra.mxu0 0
      %1789 = vmatpush.bf16.msra.mxu0 0
      %1790 = vmatpush.bf16.msra.mxu0 0
      %1791 = vmatpush.bf16.msra.mxu0 0
      %1792 = vmatpush.bf16.msra.mxu0 0
      %1793 = vmatpush.bf16.msra.mxu0 0
      %1794 = vmatpush.bf16.msra.mxu0 %v1782
      %1795 = vmatmul.bf16.gmra.mxu0 %v1785
      %v1796 = vpop.f32.mrf.mxu0
      %v1797 = vadd.f32 %v1775, %v1796
      %v1798 = vpop.f32.mrf.mxu0
      %1799 = vdwg.mxu0
      %v1800 = vld [vmem:[%s17] sm:$0x1]
      %v1802 = vperm.slane %v1800, 0
      %v1804 = vmul.f32 %v1797, %v1802
      %v1805 = vld [vmem:[%s18] sm:$0x1]
      %v1807 = vperm.slane %v1805, 0
      %v1809 = vadd.f32 %v1804, %v1807
      %s1810 = scalar_lea.vmem %s635, 12
      %1811 = vst.msk [vmem:[%s1810] sm:$0xf] %vm647, %v1809
      %p1812 = scmp.lt.s32.totalorder %s32, 1
      %s1813 = scalar_select %p1812, %s32, 1
      %s1814 = smul.addr %s1813, 4
      %s1815 = smul.addr %s1814, 4
      %s1816 = scalar_lea.vmem %s19, %s1815
      %p1817 = scmp.lt.s32.totalorder %s32, 1
      %s1818 = scalar_select %p1817, %s32, 1
      %s1819 = scalar_lea.vmem %s20, %s1818
      // Predicated region
      $region97: #{forward.1} parent=95 // pred_check
        %p1820 = pneg %p454
      $region98: #{forward.1} parent=95 // pred_check_branch
        %1822 = sbr.rel (%p1820) target = $region100
      $region99: #{forward.1} parent=95 // pred_region
        _
      $region100: #{forward.1} parent=95 // pred_fallthru
        _
      // Predicated region
      $region101: #{forward.1} parent=95 // pred_check
        %p1823 = pneg %p480
      $region102: #{forward.1} parent=95 // pred_check_branch
        %1825 = sbr.rel (%p1823) target = $region104
      $region103: #{forward.1} parent=95 // pred_region
        _
      $region104: #{forward.1} parent=95 // pred_fallthru
        _
    $region96: #{forward.1} parent=5 // pred_fallthru
      _
    %p1826 = scmp.le.s32.totalorder 2, %s27
    // Predicated region
    $region105: #{forward.1} parent=5 // pred_check
      %p1827 = pneg %p1826
    $region106: #{forward.1} parent=5 // pred_check_branch
      %1829 = sbr.rel (%p1827) target = $region108
    $region107: #{forward.1} parent=5 // pred_region
      %s1830 = ssub.s32 %s27, 2
      // Predicated region
      $region109: #{forward.1} parent=107 // pred_check
        %p1831 = pneg %p460
      $region110: #{forward.1} parent=107 // pred_check_branch
        %1833 = sbr.rel (%p1831) target = $region112
      $region111: #{forward.1} parent=107 // pred_region
        %p1834 = scmp.lt.s32.totalorder %s33, 1
        %s1835 = scalar_select %p1834, %s33, 1
        %s1836 = smul.addr %s1835, 4
        %s1837 = smul.addr %s1836, 4
        %s1838 = scalar_lea.vmem %s19, %s1837
      $region112: #{forward.1} parent=107 // pred_fallthru
        _
      // Predicated region
      $region113: #{forward.1} parent=107 // pred_check
        %p1839 = pneg %p486
      $region114: #{forward.1} parent=107 // pred_check_branch
        %1841 = sbr.rel (%p1839) target = $region116
      $region115: #{forward.1} parent=107 // pred_region
        %p1842 = scmp.lt.s32.totalorder %s33, 1
        %s1843 = scalar_select %p1842, %s33, 1
        %s1844 = scalar_lea.vmem %s20, %s1843
      $region116: #{forward.1} parent=107 // pred_fallthru
        _
    $region108: #{forward.1} parent=5 // pred_fallthru
      _
  $region6: #{forward.1} parent=0 // loop_footer
    %s31 = sadd.s32 1, %s27
  $region7: #{forward.1} parent=0 // loop_footer_branch
    %26 = sbr.rel target = $region3
  $region8: #{forward.1} parent=0 // loop_exit
    _

</llo_original>
